<compile_context>
chip_gen: v7x
topology: tpu7x:2x2x1
jax: 0.10.0
libtpu: 0.0.40
codegen_flags: <defaults>
</compile_context>

<pallas_src>
import functools

import jax
import jax.numpy as jnp
import numpy as np
from jax.experimental import pallas as pl
from jax.experimental.pallas import tpu as pltpu


# ---------------------------------------------------------------------------
# In-kernel helpers
# ---------------------------------------------------------------------------
def _layernorm(x, gamma, beta, eps=1e-5):
    # x: (M, D); gamma/beta: (1, D).  PyTorch LayerNorm: biased variance, eps=1e-5.
    mu = jnp.mean(x, axis=-1, keepdims=True)
    var = jnp.mean((x - mu) ** 2, axis=-1, keepdims=True)
    return (x - mu) * jax.lax.rsqrt(var + eps) * gamma + beta


# ---------------------------------------------------------------------------
# Fused whole-transformer kernel.  grid = (batch_blocks, depth); one batch block
# per "parallel" step, one layer per "arbitrary" step.  Activation lives in x_scr.
# ---------------------------------------------------------------------------
def transformer_kernel(x_ref,
                       a_g_ref, a_b_ref, wqkv_ref, wout_ref, bout_ref,
                       f_g_ref, f_b_ref, w1_ref, b1_ref, w2_ref, b2_ref,
                       fin_g_ref, fin_b_ref,
                       o_ref,
                       x_scr, qkv_scr,
                       *, tb, seq, heads, dim_head):
    d = pl.program_id(1)
    inner = heads * dim_head
    dh = dim_head

    @pl.when(d == 0)
    def _load_x():
        # Note: x block is re-used (same block index) across depth, so this DMA +
        # copy happens once per batch block.
        x_scr[...] = x_ref[...]                     # (TB*N, D) f32, resident over depth

    x = x_scr[...]                                  # (TB*N, D) f32

    # ------------------ attention block (pre-norm + residual) ------------------
    xn = _layernorm(x, a_g_ref[0], a_b_ref[0])      # (TB*N, D) f32
    # Softmax scale is already folded into the Q columns of wqkv (weight prep).
    qkv_scr[...] = jnp.dot(xn.astype(jnp.bfloat16), wqkv_ref[0],
                           preferred_element_type=jnp.float32).astype(jnp.bfloat16)

    row_outs = []
    for b in range(tb):                             # static unroll (tb is small)
        rows = pl.ds(b * seq, seq)
        head_outs = []
        for h in range(heads):                      # static unroll (heads is small)
            q = qkv_scr[rows, pl.ds(h * dh, dh)]                     # bf16 (N, dh)
            k = qkv_scr[rows, pl.ds(inner + h * dh, dh)]
            v = qkv_scr[rows, pl.ds(2 * inner + h * dh, dh)]
            # dots = q @ k.T  (contract last dims; no explicit transpose op)
            dots = jax.lax.dot_general(q, k, (((1,), (1,)), ((), ())),
                                       preferred_element_type=jnp.float32)
            dots = dots - jnp.max(dots, axis=-1, keepdims=True)
            e = jnp.exp(dots)                                        # f32 (EUP)
            p = e * pl.reciprocal(jnp.sum(e, axis=-1, keepdims=True), approx=True)
            head_outs.append(jnp.dot(p.astype(jnp.bfloat16), v,
                                     preferred_element_type=jnp.float32))
        row_outs.append(jnp.concatenate(head_outs, axis=-1))         # (N, inner)
    # Single full-width value (no masked sub-lane stores), cast once for the MXU.
    attn_out = jnp.concatenate(row_outs, axis=0).astype(jnp.bfloat16)  # (TB*N, inner)

    # Single fused output projection: contraction = heads*dim_head.
    y = jnp.dot(attn_out, wout_ref[0], preferred_element_type=jnp.float32) + bout_ref[0]
    x = x + y                                        # residual

    # ------------------------- feed-forward block ------------------------------
    xn2 = _layernorm(x, f_g_ref[0], f_b_ref[0])
    h1 = jnp.dot(xn2.astype(jnp.bfloat16), w1_ref[0],
                 preferred_element_type=jnp.float32) + b1_ref[0]
    h1 = jax.nn.gelu(h1, approximate=True)           # tanh GELU (see TODO above)
    y2 = jnp.dot(h1.astype(jnp.bfloat16), w2_ref[0],
                 preferred_element_type=jnp.float32) + b2_ref[0]
    x = x + y2                                       # residual

    x_scr[...] = x                                   # carry to next layer

    @pl.when(d == pl.num_programs(1) - 1)
    def _finalize():
        o_ref[...] = _layernorm(x, fin_g_ref[...], fin_b_ref[...]).astype(o_ref.dtype)


# ---------------------------------------------------------------------------
# Wrapper helpers
# ---------------------------------------------------------------------------
def _vmem_cap_bytes():
    """Per-generation VMEM spend ceiling (leave compiler headroom below physical)."""
    phys = 64 * 1024 * 1024
    try:
        info = pltpu.get_tpu_info()
        phys = int(getattr(info, "vmem_capacity_bytes", phys))
    except Exception:
        pass
    if phys <= 64 * 1024 * 1024:          # v7x-class: 64 MiB per TensorCore
        return 48 * 1024 * 1024
    return 100 * 1024 * 1024              # v5e / v6e: 128 MiB physical


def _choose_tb(batch, seq, fixed_bytes, per_row_bytes, cap):
    """Largest batch tile TB (a divisor of batch) with TB*seq >= ~256 that fits VMEM."""
    divisors = [d for d in range(1, batch + 1) if batch % d == 0]
    target_rows = 256
    tb = next((d for d in divisors if d * seq >= target_rows), divisors[-1])
    while tb > 1 and fixed_bytes + tb * per_row_bytes > cap:
        tb = max(d for d in divisors if d < tb)
    return tb


def _per_layer_spec(arr):
    nd = arr.ndim
    return pl.BlockSpec((1,) + tuple(arr.shape[1:]),
                        lambda g, d, _nd=nd: (d,) + (0,) * (_nd - 1))


def _const_spec(arr):
    nd = arr.ndim
    return pl.BlockSpec(tuple(arr.shape), lambda g, d, _nd=nd: (0,) * _nd)


def prepare_weights(params, *, heads, dim_head):
    """One-time weight prep: fold softmax scale into Q columns, cast matmul weights
    to bf16 (done ONCE, not per forward)."""
    inner = heads * dim_head
    scale = dim_head ** -0.5
    prep = dict(params)
    prep["w_qkv"] = params["w_qkv"].at[:, :, :inner].multiply(scale).astype(jnp.bfloat16)
    prep["w_out"] = params["w_out"].astype(jnp.bfloat16)
    prep["w1"] = params["w1"].astype(jnp.bfloat16)
    prep["w2"] = params["w2"].astype(jnp.bfloat16)
    return prep


# ---------------------------------------------------------------------------
# pallas_call wrapper
# ---------------------------------------------------------------------------
def transformer_forward(x, params, *, heads, dim_head):
    """`params` must come from prepare_weights()."""
    B, N, D = x.shape
    depth = params["w_qkv"].shape[0]
    inner = heads * dim_head
    assert params["w_qkv"].shape[-1] == 3 * inner

    per_layer_arrays = (params["attn_ln_g"], params["attn_ln_b"], params["w_qkv"],
                        params["w_out"], params["b_out"], params["ff_ln_g"],
                        params["ff_ln_b"], params["w1"], params["b1"],
                        params["w2"], params["b2"])
    per_layer_bytes = sum(int(np.prod(a.shape[1:])) * a.dtype.itemsize
                          for a in per_layer_arrays)
    const_bytes = sum(int(np.prod(a.shape)) * a.dtype.itemsize
                      for a in (params["final_g"], params["final_b"]))

    # Per-batch-row VMEM footprint: 2x input block + 2x output block (double-buffered)
    # + f32 activation scratch + bf16 qkv scratch.
    per_row_bytes = N * (2 * D * 4 + 2 * D * 4 + D * 4 + 3 * inner * 2)
    cap = _vmem_cap_bytes()
    tb = _choose_tb(B, N,
                    fixed_bytes=2 * per_layer_bytes + const_bytes + (2 << 20),
                    per_row_bytes=per_row_bytes, cap=cap)
    M = tb * N

    block_bytes = 2 * M * D * 4                      # one input + one output block
    scratch_bytes = M * D * 4 + M * 3 * inner * 2
    need = 2 * per_layer_bytes + const_bytes + 2 * block_bytes + scratch_bytes
    vmem_limit = int(min(cap, max(8 << 20, int(need * 1.25) + (2 << 20))))

    x2d = x.reshape(B * N, D)
    x_spec = pl.BlockSpec((M, D), lambda g, d: (g, 0))

    kern = functools.partial(transformer_kernel, tb=tb, seq=N,
                             heads=heads, dim_head=dim_head)

    out2d = pl.pallas_call(
        kern,
        out_shape=jax.ShapeDtypeStruct((B * N, D), x.dtype),
        grid=(B // tb, depth),
        in_specs=[
            x_spec,
            _per_layer_spec(params["attn_ln_g"]),
            _per_layer_spec(params["attn_ln_b"]),
            _per_layer_spec(params["w_qkv"]),
            _per_layer_spec(params["w_out"]),
            _per_layer_spec(params["b_out"]),
            _per_layer_spec(params["ff_ln_g"]),
            _per_layer_spec(params["ff_ln_b"]),
            _per_layer_spec(params["w1"]),
            _per_layer_spec(params["b1"]),
            _per_layer_spec(params["w2"]),
            _per_layer_spec(params["b2"]),
            _const_spec(params["final_g"]),
            _const_spec(params["final_b"]),
        ],
        out_specs=x_spec,
        scratch_shapes=[
            pltpu.VMEM((M, D), jnp.float32),         # resident activation
            pltpu.VMEM((M, 3 * inner), jnp.bfloat16),  # qkv staging (bf16)
        ],
        compiler_params=pltpu.CompilerParams(
            dimension_semantics=("parallel", "arbitrary"),
            vmem_limit_bytes=vmem_limit,
        ),
    )(x2d,
      params["attn_ln_g"], params["attn_ln_b"], params["w_qkv"],
      params["w_out"], params["b_out"], params["ff_ln_g"], params["ff_ln_b"],
      params["w1"], params["b1"], params["w2"], params["b2"],
      params["final_g"], params["final_b"])
    return out2d.reshape(B, N, D)


# ---------------------------------------------------------------------------
# Deterministic parameter initialization (weights stacked along depth)
# ---------------------------------------------------------------------------
def init_params(key, *, dim, depth, heads, dim_head, mlp_dim):
    inner = heads * dim_head
    k = jax.random.split(key, 4)
    return {
        "attn_ln_g": jnp.ones((depth, 1, dim), jnp.float32),
        "attn_ln_b": jnp.zeros((depth, 1, dim), jnp.float32),
        "w_qkv": 0.02 * jax.random.normal(k[0], (depth, dim, 3 * inner), jnp.float32),
        "w_out": 0.02 * jax.random.normal(k[1], (depth, inner, dim), jnp.float32),
        "b_out": jnp.zeros((depth, 1, dim), jnp.float32),
        "ff_ln_g": jnp.ones((depth, 1, dim), jnp.float32),
        "ff_ln_b": jnp.zeros((depth, 1, dim), jnp.float32),
        "w1": 0.02 * jax.random.normal(k[2], (depth, dim, mlp_dim), jnp.float32),
        "b1": jnp.zeros((depth, 1, mlp_dim), jnp.float32),
        "w2": 0.02 * jax.random.normal(k[3], (depth, mlp_dim, dim), jnp.float32),
        "b2": jnp.zeros((depth, 1, dim), jnp.float32),
        "final_g": jnp.ones((1, dim), jnp.float32),
        "final_b": jnp.zeros((1, dim), jnp.float32),
    }


# ---------------------------------------------------------------------------
# Pure-JAX f32 reference (mirrors PyTorch semantics exactly)
# ---------------------------------------------------------------------------
def _ref_ln(x, g, b, eps=1e-5):
    mu = jnp.mean(x, axis=-1, keepdims=True)
    var = jnp.mean((x - mu) ** 2, axis=-1, keepdims=True)
    return (x - mu) / jnp.sqrt(var + eps) * g + b


def transformer_ref(x, params, *, heads, dim_head):
    scale = dim_head ** -0.5
    depth = params["w_qkv"].shape[0]
    B, N, _ = x.shape
    for d in range(depth):
        xn = _ref_ln(x, params["attn_ln_g"][d], params["attn_ln_b"][d])
        qkv = xn @ params["w_qkv"][d]
        q, k, v = jnp.split(qkv, 3, axis=-1)

        def heads_view(t):
            return t.reshape(B, N, heads, dim_head).transpose(0, 2, 1, 3)
        q, k, v = map(heads_view, (q, k, v))
        dots = jnp.einsum("bhnd,bhmd->bhnm", q, k) * scale
        attn = jax.nn.softmax(dots, axis=-1)
        out = jnp.einsum("bhnm,bhmd->bhnd", attn, v)
        out = out.transpose(0, 2, 1, 3).reshape(B, N, heads * dim_head)
        x = out @ params["w_out"][d] + params["b_out"][d] + x

        h = _ref_ln(x, params["ff_ln_g"][d], params["ff_ln_b"][d]) @ params["w1"][d] \
            + params["b1"][d]
        h = jax.nn.gelu(h, approximate=False)        # exact erf (PyTorch default)
        x = h @ params["w2"][d] + params["b2"][d] + x
    return _ref_ln(x, params["final_g"], params["final_b"])


# ---------------------------------------------------------------------------
if __name__ == "__main__":
    B, N, dim = 2, 8, 32
    depth, heads, dim_head, mlp_dim = 2, 4, 8, 64

    key = jax.random.PRNGKey(0)
    key, kx, kp = jax.random.split(key, 3)
    x = jax.random.normal(kx, (B, N, dim), jnp.float32)
    params = init_params(kp, dim=dim, depth=depth, heads=heads,
                         dim_head=dim_head, mlp_dim=mlp_dim)

    prep = prepare_weights(params, heads=heads, dim_head=dim_head)   # one-time bf16 prep
    out = transformer_forward(x, prep, heads=heads, dim_head=dim_head)
    out = jax.block_until_ready(out)

    ref = transformer_ref(x, params, heads=heads, dim_head=dim_head)
    # bf16 matmul operands (f32 accumulation), approx softmax reciprocal and tanh-GELU
    # loosen tolerances.
    np.testing.assert_allclose(np.asarray(out), np.asarray(ref),
                               rtol=2e-2, atol=2e-2)
    print("KERNEL_OK")
</pallas_src>

<mosaic_0001>
module attributes {stable_mosaic.version = 11 : i64} {
  func.func @transformer_kernel(%arg0: i32, %arg1: i32, %arg2: memref<16x32xf32, #tpu.memory_space<vmem>>, %arg3: memref<1x1x32xf32, #tpu.memory_space<vmem>>, %arg4: memref<1x1x32xf32, #tpu.memory_space<vmem>>, %arg5: memref<1x32x96xbf16, #tpu.memory_space<vmem>>, %arg6: memref<1x32x32xbf16, #tpu.memory_space<vmem>>, %arg7: memref<1x1x32xf32, #tpu.memory_space<vmem>>, %arg8: memref<1x1x32xf32, #tpu.memory_space<vmem>>, %arg9: memref<1x1x32xf32, #tpu.memory_space<vmem>>, %arg10: memref<1x32x64xbf16, #tpu.memory_space<vmem>>, %arg11: memref<1x1x64xf32, #tpu.memory_space<vmem>>, %arg12: memref<1x64x32xbf16, #tpu.memory_space<vmem>>, %arg13: memref<1x1x32xf32, #tpu.memory_space<vmem>>, %arg14: memref<1x32xf32, #tpu.memory_space<vmem>>, %arg15: memref<1x32xf32, #tpu.memory_space<vmem>>, %arg16: memref<16x32xf32, #tpu.memory_space<vmem>>, %arg17: memref<16x32xf32, #tpu.memory_space<vmem>>, %arg18: memref<16x96xbf16, #tpu.memory_space<vmem>>) attributes {dimension_semantics = [#tpu.dimension_semantics<parallel>, #tpu.dimension_semantics<arbitrary>], iteration_bounds = array<i64: 1, 2>, scalar_prefetch = 0 : i64, scratch_operands = 2 : i64, tpu.core_type = #tpu.core_type<tc>, window_params = [{transform_indices = @transform_0, window_bounds = array<i64: 16, 32>}, {transform_indices = @transform_1, window_bounds = array<i64: 1, 1, 32>}, {transform_indices = @transform_2, window_bounds = array<i64: 1, 1, 32>}, {transform_indices = @transform_3, window_bounds = array<i64: 1, 32, 96>}, {transform_indices = @transform_4, window_bounds = array<i64: 1, 32, 32>}, {transform_indices = @transform_5, window_bounds = array<i64: 1, 1, 32>}, {transform_indices = @transform_6, window_bounds = array<i64: 1, 1, 32>}, {transform_indices = @transform_7, window_bounds = array<i64: 1, 1, 32>}, {transform_indices = @transform_8, window_bounds = array<i64: 1, 32, 64>}, {transform_indices = @transform_9, window_bounds = array<i64: 1, 1, 64>}, {transform_indices = @transform_10, window_bounds = array<i64: 1, 64, 32>}, {transform_indices = @transform_11, window_bounds = array<i64: 1, 1, 32>}, {pipeline_mode = #tpu.pipeline_mode<synchronous>, transform_indices = @transform_12, window_bounds = array<i64: 1, 32>}, {pipeline_mode = #tpu.pipeline_mode<synchronous>, transform_indices = @transform_13, window_bounds = array<i64: 1, 32>}, {transform_indices = @transform_14, window_bounds = array<i64: 16, 32>}]} {
    %c0_i32 = arith.constant 0 : i32
    %0 = arith.cmpi eq, %arg1, %c0_i32 : i32
    %1 = arith.extui %0 : i1 to i32
    %c0_i32_0 = arith.constant 0 : i32
    %2 = arith.cmpi ne, %1, %c0_i32_0 : i32
    scf.if %2 {
      %c0_126 = arith.constant 0 : index
      %c0_127 = arith.constant 0 : index
      %236 = vector.load %arg2[%c0_126, %c0_127] : memref<16x32xf32, #tpu.memory_space<vmem>>, vector<16x32xf32>
      %c0_128 = arith.constant 0 : index
      %c0_129 = arith.constant 0 : index
      %237 = vector.load %arg17[%c0_128, %c0_129] : memref<16x32xf32, #tpu.memory_space<vmem>>, vector<16x32xf32>
      tpu.vector_store %arg17[%c0_128, %c0_129], %236 {strides = array<i32>} : memref<16x32xf32, #tpu.memory_space<vmem>>, vector<16x32xf32>,
    } else {
    }
    %c0 = arith.constant 0 : index
    %c0_1 = arith.constant 0 : index
    %3 = vector.load %arg17[%c0, %c0_1] : memref<16x32xf32, #tpu.memory_space<vmem>>, vector<16x32xf32>
    %c0_2 = arith.constant 0 : index
    %c0_3 = arith.constant 0 : index
    %c0_4 = arith.constant 0 : index
    %4 = vector.load %arg3[%c0_2, %c0_3, %c0_4] : memref<1x1x32xf32, #tpu.memory_space<vmem>>, vector<1x1x32xf32>
    %5 = vector.shape_cast %4 : vector<1x1x32xf32> to vector<1x32xf32>
    %c0_5 = arith.constant 0 : index
    %c0_6 = arith.constant 0 : index
    %c0_7 = arith.constant 0 : index
    %6 = vector.load %arg4[%c0_5, %c0_6, %c0_7] : memref<1x1x32xf32, #tpu.memory_space<vmem>>, vector<1x1x32xf32>
    %7 = vector.shape_cast %6 : vector<1x1x32xf32> to vector<1x32xf32>
    %cst = arith.constant dense<0.000000e+00> : vector<16xf32>
    %8 = vector.multi_reduction <add>, %3, %cst [1] : vector<16x32xf32> to vector<16xf32>
    %9 = vector.shape_cast %8 : vector<16xf32> to vector<16x1xf32>
    %cst_8 = arith.constant 3.200000e+01 : f32
    %10 = vector.broadcast %cst_8 : f32 to vector<16x1xf32>
    %11 = arith.divf %9, %10 : vector<16x1xf32>
    %12 = vector.broadcast %11 : vector<16x1xf32> to vector<16x32xf32>
    %13 = arith.subf %3, %12 : vector<16x32xf32>
    %14 = arith.mulf %13, %13 : vector<16x32xf32>
    %cst_9 = arith.constant dense<0.000000e+00> : vector<16xf32>
    %15 = vector.multi_reduction <add>, %14, %cst_9 [1] : vector<16x32xf32> to vector<16xf32>
    %16 = vector.shape_cast %15 : vector<16xf32> to vector<16x1xf32>
    %cst_10 = arith.constant 3.200000e+01 : f32
    %17 = vector.broadcast %cst_10 : f32 to vector<16x1xf32>
    %18 = arith.divf %16, %17 : vector<16x1xf32>
    %19 = vector.broadcast %11 : vector<16x1xf32> to vector<16x32xf32>
    %20 = arith.subf %3, %19 : vector<16x32xf32>
    %cst_11 = arith.constant 9.99999974E-6 : f32
    %21 = vector.broadcast %cst_11 : f32 to vector<16x1xf32>
    %22 = arith.addf %18, %21 : vector<16x1xf32>
    %23 = math.rsqrt %22 : vector<16x1xf32>
    %24 = vector.broadcast %23 : vector<16x1xf32> to vector<16x32xf32>
    %25 = arith.mulf %20, %24 : vector<16x32xf32>
    %26 = vector.broadcast %5 : vector<1x32xf32> to vector<16x32xf32>
    %27 = arith.mulf %25, %26 : vector<16x32xf32>
    %28 = vector.broadcast %7 : vector<1x32xf32> to vector<16x32xf32>
    %29 = arith.addf %27, %28 : vector<16x32xf32>
    %30 = arith.truncf %29 : vector<16x32xf32> to vector<16x32xbf16>
    %c0_12 = arith.constant 0 : index
    %c0_13 = arith.constant 0 : index
    %c0_14 = arith.constant 0 : index
    %31 = vector.load %arg5[%c0_12, %c0_13, %c0_14] : memref<1x32x96xbf16, #tpu.memory_space<vmem>>, vector<1x32x96xbf16>
    %32 = vector.shape_cast %31 : vector<1x32x96xbf16> to vector<32x96xbf16>
    %cst_15 = arith.constant dense<0.000000e+00> : vector<16x96xf32>
    %33 = tpu.matmul %30, %32, %cst_15 {dimension_numbers = #tpu.dot_dimension_numbers<[1], [0], [0], [1], [0, 0, 1, 1], [], []>} : vector<16x32xbf16>, vector<32x96xbf16>, vector<16x96xf32> -> vector<16x96xf32>
    %34 = arith.truncf %33 : vector<16x96xf32> to vector<16x96xbf16>
    %c0_16 = arith.constant 0 : index
    %c0_17 = arith.constant 0 : index
    %35 = vector.load %arg18[%c0_16, %c0_17] : memref<16x96xbf16, #tpu.memory_space<vmem>>, vector<16x96xbf16>
    tpu.vector_store %arg18[%c0_16, %c0_17], %34 {strides = array<i32>} : memref<16x96xbf16, #tpu.memory_space<vmem>>, vector<16x96xbf16>,
    %c0_18 = arith.constant 0 : index
    %c0_19 = arith.constant 0 : index
    %36 = vector.load %arg18[%c0_18, %c0_19] : memref<16x96xbf16, #tpu.memory_space<vmem>>, vector<8x8xbf16>
    %c0_20 = arith.constant 0 : index
    %c32 = arith.constant 32 : index
    %37 = vector.load %arg18[%c0_20, %c32] : memref<16x96xbf16, #tpu.memory_space<vmem>>, vector<8x8xbf16>
    %c0_21 = arith.constant 0 : index
    %c64 = arith.constant 64 : index
    %38 = vector.load %arg18[%c0_21, %c64] : memref<16x96xbf16, #tpu.memory_space<vmem>>, vector<8x8xbf16>
    %cst_22 = arith.constant dense<0.000000e+00> : vector<8x8xf32>
    %39 = tpu.matmul %36, %37, %cst_22 {dimension_numbers = #tpu.dot_dimension_numbers<[1], [1], [0], [0], [0, 0, 1, 0], [], []>} : vector<8x8xbf16>, vector<8x8xbf16>, vector<8x8xf32> -> vector<8x8xf32>
    %cst_23 = arith.constant dense<0xFF800000> : vector<8xf32>
    %40 = vector.multi_reduction <maximumf>, %39, %cst_23 [1] : vector<8x8xf32> to vector<8xf32>
    %41 = vector.shape_cast %40 : vector<8xf32> to vector<8x1xf32>
    %42 = vector.broadcast %41 : vector<8x1xf32> to vector<8x8xf32>
    %43 = arith.subf %39, %42 : vector<8x8xf32>
    %44 = math.exp %43 : vector<8x8xf32>
    %cst_24 = arith.constant dense<0.000000e+00> : vector<8xf32>
    %45 = vector.multi_reduction <add>, %44, %cst_24 [1] : vector<8x8xf32> to vector<8xf32>
    %46 = vector.shape_cast %45 : vector<8xf32> to vector<8x1xf32>
    %47 = tpu.reciprocal %46 {approx = true} : vector<8x1xf32> -> vector<8x1xf32>
    %48 = vector.broadcast %47 : vector<8x1xf32> to vector<8x8xf32>
    %49 = arith.mulf %44, %48 : vector<8x8xf32>
    %50 = arith.truncf %49 : vector<8x8xf32> to vector<8x8xbf16>
    %cst_25 = arith.constant dense<0.000000e+00> : vector<8x8xf32>
    %51 = tpu.matmul %50, %38, %cst_25 {dimension_numbers = #tpu.dot_dimension_numbers<[1], [0], [0], [1], [0, 0, 1, 1], [], []>} : vector<8x8xbf16>, vector<8x8xbf16>, vector<8x8xf32> -> vector<8x8xf32>
    %c0_26 = arith.constant 0 : index
    %c8 = arith.constant 8 : index
    %52 = vector.load %arg18[%c0_26, %c8] : memref<16x96xbf16, #tpu.memory_space<vmem>>, vector<8x8xbf16>
    %c0_27 = arith.constant 0 : index
    %c40 = arith.constant 40 : index
    %53 = vector.load %arg18[%c0_27, %c40] : memref<16x96xbf16, #tpu.memory_space<vmem>>, vector<8x8xbf16>
    %c0_28 = arith.constant 0 : index
    %c72 = arith.constant 72 : index
    %54 = vector.load %arg18[%c0_28, %c72] : memref<16x96xbf16, #tpu.memory_space<vmem>>, vector<8x8xbf16>
    %cst_29 = arith.constant dense<0.000000e+00> : vector<8x8xf32>
    %55 = tpu.matmul %52, %53, %cst_29 {dimension_numbers = #tpu.dot_dimension_numbers<[1], [1], [0], [0], [0, 0, 1, 0], [], []>} : vector<8x8xbf16>, vector<8x8xbf16>, vector<8x8xf32> -> vector<8x8xf32>
    %cst_30 = arith.constant dense<0xFF800000> : vector<8xf32>
    %56 = vector.multi_reduction <maximumf>, %55, %cst_30 [1] : vector<8x8xf32> to vector<8xf32>
    %57 = vector.shape_cast %56 : vector<8xf32> to vector<8x1xf32>
    %58 = vector.broadcast %57 : vector<8x1xf32> to vector<8x8xf32>
    %59 = arith.subf %55, %58 : vector<8x8xf32>
    %60 = math.exp %59 : vector<8x8xf32>
    %cst_31 = arith.constant dense<0.000000e+00> : vector<8xf32>
    %61 = vector.multi_reduction <add>, %60, %cst_31 [1] : vector<8x8xf32> to vector<8xf32>
    %62 = vector.shape_cast %61 : vector<8xf32> to vector<8x1xf32>
    %63 = tpu.reciprocal %62 {approx = true} : vector<8x1xf32> -> vector<8x1xf32>
    %64 = vector.broadcast %63 : vector<8x1xf32> to vector<8x8xf32>
    %65 = arith.mulf %60, %64 : vector<8x8xf32>
    %66 = arith.truncf %65 : vector<8x8xf32> to vector<8x8xbf16>
    %cst_32 = arith.constant dense<0.000000e+00> : vector<8x8xf32>
    %67 = tpu.matmul %66, %54, %cst_32 {dimension_numbers = #tpu.dot_dimension_numbers<[1], [0], [0], [1], [0, 0, 1, 1], [], []>} : vector<8x8xbf16>, vector<8x8xbf16>, vector<8x8xf32> -> vector<8x8xf32>
    %c0_33 = arith.constant 0 : index
    %c16 = arith.constant 16 : index
    %68 = vector.load %arg18[%c0_33, %c16] : memref<16x96xbf16, #tpu.memory_space<vmem>>, vector<8x8xbf16>
    %c0_34 = arith.constant 0 : index
    %c48 = arith.constant 48 : index
    %69 = vector.load %arg18[%c0_34, %c48] : memref<16x96xbf16, #tpu.memory_space<vmem>>, vector<8x8xbf16>
    %c0_35 = arith.constant 0 : index
    %c80 = arith.constant 80 : index
    %70 = vector.load %arg18[%c0_35, %c80] : memref<16x96xbf16, #tpu.memory_space<vmem>>, vector<8x8xbf16>
    %cst_36 = arith.constant dense<0.000000e+00> : vector<8x8xf32>
    %71 = tpu.matmul %68, %69, %cst_36 {dimension_numbers = #tpu.dot_dimension_numbers<[1], [1], [0], [0], [0, 0, 1, 0], [], []>} : vector<8x8xbf16>, vector<8x8xbf16>, vector<8x8xf32> -> vector<8x8xf32>
    %cst_37 = arith.constant dense<0xFF800000> : vector<8xf32>
    %72 = vector.multi_reduction <maximumf>, %71, %cst_37 [1] : vector<8x8xf32> to vector<8xf32>
    %73 = vector.shape_cast %72 : vector<8xf32> to vector<8x1xf32>
    %74 = vector.broadcast %73 : vector<8x1xf32> to vector<8x8xf32>
    %75 = arith.subf %71, %74 : vector<8x8xf32>
    %76 = math.exp %75 : vector<8x8xf32>
    %cst_38 = arith.constant dense<0.000000e+00> : vector<8xf32>
    %77 = vector.multi_reduction <add>, %76, %cst_38 [1] : vector<8x8xf32> to vector<8xf32>
    %78 = vector.shape_cast %77 : vector<8xf32> to vector<8x1xf32>
    %79 = tpu.reciprocal %78 {approx = true} : vector<8x1xf32> -> vector<8x1xf32>
    %80 = vector.broadcast %79 : vector<8x1xf32> to vector<8x8xf32>
    %81 = arith.mulf %76, %80 : vector<8x8xf32>
    %82 = arith.truncf %81 : vector<8x8xf32> to vector<8x8xbf16>
    %cst_39 = arith.constant dense<0.000000e+00> : vector<8x8xf32>
    %83 = tpu.matmul %82, %70, %cst_39 {dimension_numbers = #tpu.dot_dimension_numbers<[1], [0], [0], [1], [0, 0, 1, 1], [], []>} : vector<8x8xbf16>, vector<8x8xbf16>, vector<8x8xf32> -> vector<8x8xf32>
    %c0_40 = arith.constant 0 : index
    %c24 = arith.constant 24 : index
    %84 = vector.load %arg18[%c0_40, %c24] : memref<16x96xbf16, #tpu.memory_space<vmem>>, vector<8x8xbf16>
    %c0_41 = arith.constant 0 : index
    %c56 = arith.constant 56 : index
    %85 = vector.load %arg18[%c0_41, %c56] : memref<16x96xbf16, #tpu.memory_space<vmem>>, vector<8x8xbf16>
    %c0_42 = arith.constant 0 : index
    %c88 = arith.constant 88 : index
    %86 = vector.load %arg18[%c0_42, %c88] : memref<16x96xbf16, #tpu.memory_space<vmem>>, vector<8x8xbf16>
    %cst_43 = arith.constant dense<0.000000e+00> : vector<8x8xf32>
    %87 = tpu.matmul %84, %85, %cst_43 {dimension_numbers = #tpu.dot_dimension_numbers<[1], [1], [0], [0], [0, 0, 1, 0], [], []>} : vector<8x8xbf16>, vector<8x8xbf16>, vector<8x8xf32> -> vector<8x8xf32>
    %cst_44 = arith.constant dense<0xFF800000> : vector<8xf32>
    %88 = vector.multi_reduction <maximumf>, %87, %cst_44 [1] : vector<8x8xf32> to vector<8xf32>
    %89 = vector.shape_cast %88 : vector<8xf32> to vector<8x1xf32>
    %90 = vector.broadcast %89 : vector<8x1xf32> to vector<8x8xf32>
    %91 = arith.subf %87, %90 : vector<8x8xf32>
    %92 = math.exp %91 : vector<8x8xf32>
    %cst_45 = arith.constant dense<0.000000e+00> : vector<8xf32>
    %93 = vector.multi_reduction <add>, %92, %cst_45 [1] : vector<8x8xf32> to vector<8xf32>
    %94 = vector.shape_cast %93 : vector<8xf32> to vector<8x1xf32>
    %95 = tpu.reciprocal %94 {approx = true} : vector<8x1xf32> -> vector<8x1xf32>
    %96 = vector.broadcast %95 : vector<8x1xf32> to vector<8x8xf32>
    %97 = arith.mulf %92, %96 : vector<8x8xf32>
    %98 = arith.truncf %97 : vector<8x8xf32> to vector<8x8xbf16>
    %cst_46 = arith.constant dense<0.000000e+00> : vector<8x8xf32>
    %99 = tpu.matmul %98, %86, %cst_46 {dimension_numbers = #tpu.dot_dimension_numbers<[1], [0], [0], [1], [0, 0, 1, 1], [], []>} : vector<8x8xbf16>, vector<8x8xbf16>, vector<8x8xf32> -> vector<8x8xf32>
    %100 = tpu.concatenate %51, %67, %83, %99 in 1 : vector<8x8xf32>, vector<8x8xf32>, vector<8x8xf32>, vector<8x8xf32> -> vector<8x32xf32>
    %c8_47 = arith.constant 8 : index
    %c0_48 = arith.constant 0 : index
    %101 = vector.load %arg18[%c8_47, %c0_48] : memref<16x96xbf16, #tpu.memory_space<vmem>>, vector<8x8xbf16>
    %c8_49 = arith.constant 8 : index
    %c32_50 = arith.constant 32 : index
    %102 = vector.load %arg18[%c8_49, %c32_50] : memref<16x96xbf16, #tpu.memory_space<vmem>>, vector<8x8xbf16>
    %c8_51 = arith.constant 8 : index
    %c64_52 = arith.constant 64 : index
    %103 = vector.load %arg18[%c8_51, %c64_52] : memref<16x96xbf16, #tpu.memory_space<vmem>>, vector<8x8xbf16>
    %cst_53 = arith.constant dense<0.000000e+00> : vector<8x8xf32>
    %104 = tpu.matmul %101, %102, %cst_53 {dimension_numbers = #tpu.dot_dimension_numbers<[1], [1], [0], [0], [0, 0, 1, 0], [], []>} : vector<8x8xbf16>, vector<8x8xbf16>, vector<8x8xf32> -> vector<8x8xf32>
    %cst_54 = arith.constant dense<0xFF800000> : vector<8xf32>
    %105 = vector.multi_reduction <maximumf>, %104, %cst_54 [1] : vector<8x8xf32> to vector<8xf32>
    %106 = vector.shape_cast %105 : vector<8xf32> to vector<8x1xf32>
    %107 = vector.broadcast %106 : vector<8x1xf32> to vector<8x8xf32>
    %108 = arith.subf %104, %107 : vector<8x8xf32>
    %109 = math.exp %108 : vector<8x8xf32>
    %cst_55 = arith.constant dense<0.000000e+00> : vector<8xf32>
    %110 = vector.multi_reduction <add>, %109, %cst_55 [1] : vector<8x8xf32> to vector<8xf32>
    %111 = vector.shape_cast %110 : vector<8xf32> to vector<8x1xf32>
    %112 = tpu.reciprocal %111 {approx = true} : vector<8x1xf32> -> vector<8x1xf32>
    %113 = vector.broadcast %112 : vector<8x1xf32> to vector<8x8xf32>
    %114 = arith.mulf %109, %113 : vector<8x8xf32>
    %115 = arith.truncf %114 : vector<8x8xf32> to vector<8x8xbf16>
    %cst_56 = arith.constant dense<0.000000e+00> : vector<8x8xf32>
    %116 = tpu.matmul %115, %103, %cst_56 {dimension_numbers = #tpu.dot_dimension_numbers<[1], [0], [0], [1], [0, 0, 1, 1], [], []>} : vector<8x8xbf16>, vector<8x8xbf16>, vector<8x8xf32> -> vector<8x8xf32>
    %c8_57 = arith.constant 8 : index
    %c8_58 = arith.constant 8 : index
    %117 = vector.load %arg18[%c8_57, %c8_58] : memref<16x96xbf16, #tpu.memory_space<vmem>>, vector<8x8xbf16>
    %c8_59 = arith.constant 8 : index
    %c40_60 = arith.constant 40 : index
    %118 = vector.load %arg18[%c8_59, %c40_60] : memref<16x96xbf16, #tpu.memory_space<vmem>>, vector<8x8xbf16>
    %c8_61 = arith.constant 8 : index
    %c72_62 = arith.constant 72 : index
    %119 = vector.load %arg18[%c8_61, %c72_62] : memref<16x96xbf16, #tpu.memory_space<vmem>>, vector<8x8xbf16>
    %cst_63 = arith.constant dense<0.000000e+00> : vector<8x8xf32>
    %120 = tpu.matmul %117, %118, %cst_63 {dimension_numbers = #tpu.dot_dimension_numbers<[1], [1], [0], [0], [0, 0, 1, 0], [], []>} : vector<8x8xbf16>, vector<8x8xbf16>, vector<8x8xf32> -> vector<8x8xf32>
    %cst_64 = arith.constant dense<0xFF800000> : vector<8xf32>
    %121 = vector.multi_reduction <maximumf>, %120, %cst_64 [1] : vector<8x8xf32> to vector<8xf32>
    %122 = vector.shape_cast %121 : vector<8xf32> to vector<8x1xf32>
    %123 = vector.broadcast %122 : vector<8x1xf32> to vector<8x8xf32>
    %124 = arith.subf %120, %123 : vector<8x8xf32>
    %125 = math.exp %124 : vector<8x8xf32>
    %cst_65 = arith.constant dense<0.000000e+00> : vector<8xf32>
    %126 = vector.multi_reduction <add>, %125, %cst_65 [1] : vector<8x8xf32> to vector<8xf32>
    %127 = vector.shape_cast %126 : vector<8xf32> to vector<8x1xf32>
    %128 = tpu.reciprocal %127 {approx = true} : vector<8x1xf32> -> vector<8x1xf32>
    %129 = vector.broadcast %128 : vector<8x1xf32> to vector<8x8xf32>
    %130 = arith.mulf %125, %129 : vector<8x8xf32>
    %131 = arith.truncf %130 : vector<8x8xf32> to vector<8x8xbf16>
    %cst_66 = arith.constant dense<0.000000e+00> : vector<8x8xf32>
    %132 = tpu.matmul %131, %119, %cst_66 {dimension_numbers = #tpu.dot_dimension_numbers<[1], [0], [0], [1], [0, 0, 1, 1], [], []>} : vector<8x8xbf16>, vector<8x8xbf16>, vector<8x8xf32> -> vector<8x8xf32>
    %c8_67 = arith.constant 8 : index
    %c16_68 = arith.constant 16 : index
    %133 = vector.load %arg18[%c8_67, %c16_68] : memref<16x96xbf16, #tpu.memory_space<vmem>>, vector<8x8xbf16>
    %c8_69 = arith.constant 8 : index
    %c48_70 = arith.constant 48 : index
    %134 = vector.load %arg18[%c8_69, %c48_70] : memref<16x96xbf16, #tpu.memory_space<vmem>>, vector<8x8xbf16>
    %c8_71 = arith.constant 8 : index
    %c80_72 = arith.constant 80 : index
    %135 = vector.load %arg18[%c8_71, %c80_72] : memref<16x96xbf16, #tpu.memory_space<vmem>>, vector<8x8xbf16>
    %cst_73 = arith.constant dense<0.000000e+00> : vector<8x8xf32>
    %136 = tpu.matmul %133, %134, %cst_73 {dimension_numbers = #tpu.dot_dimension_numbers<[1], [1], [0], [0], [0, 0, 1, 0], [], []>} : vector<8x8xbf16>, vector<8x8xbf16>, vector<8x8xf32> -> vector<8x8xf32>
    %cst_74 = arith.constant dense<0xFF800000> : vector<8xf32>
    %137 = vector.multi_reduction <maximumf>, %136, %cst_74 [1] : vector<8x8xf32> to vector<8xf32>
    %138 = vector.shape_cast %137 : vector<8xf32> to vector<8x1xf32>
    %139 = vector.broadcast %138 : vector<8x1xf32> to vector<8x8xf32>
    %140 = arith.subf %136, %139 : vector<8x8xf32>
    %141 = math.exp %140 : vector<8x8xf32>
    %cst_75 = arith.constant dense<0.000000e+00> : vector<8xf32>
    %142 = vector.multi_reduction <add>, %141, %cst_75 [1] : vector<8x8xf32> to vector<8xf32>
    %143 = vector.shape_cast %142 : vector<8xf32> to vector<8x1xf32>
    %144 = tpu.reciprocal %143 {approx = true} : vector<8x1xf32> -> vector<8x1xf32>
    %145 = vector.broadcast %144 : vector<8x1xf32> to vector<8x8xf32>
    %146 = arith.mulf %141, %145 : vector<8x8xf32>
    %147 = arith.truncf %146 : vector<8x8xf32> to vector<8x8xbf16>
    %cst_76 = arith.constant dense<0.000000e+00> : vector<8x8xf32>
    %148 = tpu.matmul %147, %135, %cst_76 {dimension_numbers = #tpu.dot_dimension_numbers<[1], [0], [0], [1], [0, 0, 1, 1], [], []>} : vector<8x8xbf16>, vector<8x8xbf16>, vector<8x8xf32> -> vector<8x8xf32>
    %c8_77 = arith.constant 8 : index
    %c24_78 = arith.constant 24 : index
    %149 = vector.load %arg18[%c8_77, %c24_78] : memref<16x96xbf16, #tpu.memory_space<vmem>>, vector<8x8xbf16>
    %c8_79 = arith.constant 8 : index
    %c56_80 = arith.constant 56 : index
    %150 = vector.load %arg18[%c8_79, %c56_80] : memref<16x96xbf16, #tpu.memory_space<vmem>>, vector<8x8xbf16>
    %c8_81 = arith.constant 8 : index
    %c88_82 = arith.constant 88 : index
    %151 = vector.load %arg18[%c8_81, %c88_82] : memref<16x96xbf16, #tpu.memory_space<vmem>>, vector<8x8xbf16>
    %cst_83 = arith.constant dense<0.000000e+00> : vector<8x8xf32>
    %152 = tpu.matmul %149, %150, %cst_83 {dimension_numbers = #tpu.dot_dimension_numbers<[1], [1], [0], [0], [0, 0, 1, 0], [], []>} : vector<8x8xbf16>, vector<8x8xbf16>, vector<8x8xf32> -> vector<8x8xf32>
    %cst_84 = arith.constant dense<0xFF800000> : vector<8xf32>
    %153 = vector.multi_reduction <maximumf>, %152, %cst_84 [1] : vector<8x8xf32> to vector<8xf32>
    %154 = vector.shape_cast %153 : vector<8xf32> to vector<8x1xf32>
    %155 = vector.broadcast %154 : vector<8x1xf32> to vector<8x8xf32>
    %156 = arith.subf %152, %155 : vector<8x8xf32>
    %157 = math.exp %156 : vector<8x8xf32>
    %cst_85 = arith.constant dense<0.000000e+00> : vector<8xf32>
    %158 = vector.multi_reduction <add>, %157, %cst_85 [1] : vector<8x8xf32> to vector<8xf32>
    %159 = vector.shape_cast %158 : vector<8xf32> to vector<8x1xf32>
    %160 = tpu.reciprocal %159 {approx = true} : vector<8x1xf32> -> vector<8x1xf32>
    %161 = vector.broadcast %160 : vector<8x1xf32> to vector<8x8xf32>
    %162 = arith.mulf %157, %161 : vector<8x8xf32>
    %163 = arith.truncf %162 : vector<8x8xf32> to vector<8x8xbf16>
    %cst_86 = arith.constant dense<0.000000e+00> : vector<8x8xf32>
    %164 = tpu.matmul %163, %151, %cst_86 {dimension_numbers = #tpu.dot_dimension_numbers<[1], [0], [0], [1], [0, 0, 1, 1], [], []>} : vector<8x8xbf16>, vector<8x8xbf16>, vector<8x8xf32> -> vector<8x8xf32>
    %165 = tpu.concatenate %116, %132, %148, %164 in 1 : vector<8x8xf32>, vector<8x8xf32>, vector<8x8xf32>, vector<8x8xf32> -> vector<8x32xf32>
    %166 = tpu.concatenate %100, %165 in 0 : vector<8x32xf32>, vector<8x32xf32> -> vector<16x32xf32>
    %167 = arith.truncf %166 : vector<16x32xf32> to vector<16x32xbf16>
    %c0_87 = arith.constant 0 : index
    %c0_88 = arith.constant 0 : index
    %c0_89 = arith.constant 0 : index
    %168 = vector.load %arg6[%c0_87, %c0_88, %c0_89] : memref<1x32x32xbf16, #tpu.memory_space<vmem>>, vector<1x32x32xbf16>
    %169 = vector.shape_cast %168 : vector<1x32x32xbf16> to vector<32x32xbf16>
    %cst_90 = arith.constant dense<0.000000e+00> : vector<16x32xf32>
    %170 = tpu.matmul %167, %169, %cst_90 {dimension_numbers = #tpu.dot_dimension_numbers<[1], [0], [0], [1], [0, 0, 1, 1], [], []>} : vector<16x32xbf16>, vector<32x32xbf16>, vector<16x32xf32> -> vector<16x32xf32>
    %c0_91 = arith.constant 0 : index
    %c0_92 = arith.constant 0 : index
    %c0_93 = arith.constant 0 : index
    %171 = vector.load %arg7[%c0_91, %c0_92, %c0_93] : memref<1x1x32xf32, #tpu.memory_space<vmem>>, vector<1x1x32xf32>
    %172 = vector.shape_cast %171 : vector<1x1x32xf32> to vector<1x32xf32>
    %173 = vector.broadcast %172 : vector<1x32xf32> to vector<16x32xf32>
    %174 = arith.addf %170, %173 : vector<16x32xf32>
    %175 = arith.addf %3, %174 : vector<16x32xf32>
    %c0_94 = arith.constant 0 : index
    %c0_95 = arith.constant 0 : index
    %c0_96 = arith.constant 0 : index
    %176 = vector.load %arg8[%c0_94, %c0_95, %c0_96] : memref<1x1x32xf32, #tpu.memory_space<vmem>>, vector<1x1x32xf32>
    %177 = vector.shape_cast %176 : vector<1x1x32xf32> to vector<1x32xf32>
    %c0_97 = arith.constant 0 : index
    %c0_98 = arith.constant 0 : index
    %c0_99 = arith.constant 0 : index
    %178 = vector.load %arg9[%c0_97, %c0_98, %c0_99] : memref<1x1x32xf32, #tpu.memory_space<vmem>>, vector<1x1x32xf32>
    %179 = vector.shape_cast %178 : vector<1x1x32xf32> to vector<1x32xf32>
    %cst_100 = arith.constant dense<0.000000e+00> : vector<16xf32>
    %180 = vector.multi_reduction <add>, %175, %cst_100 [1] : vector<16x32xf32> to vector<16xf32>
    %181 = vector.shape_cast %180 : vector<16xf32> to vector<16x1xf32>
    %cst_101 = arith.constant 3.200000e+01 : f32
    %182 = vector.broadcast %cst_101 : f32 to vector<16x1xf32>
    %183 = arith.divf %181, %182 : vector<16x1xf32>
    %184 = vector.broadcast %183 : vector<16x1xf32> to vector<16x32xf32>
    %185 = arith.subf %175, %184 : vector<16x32xf32>
    %186 = arith.mulf %185, %185 : vector<16x32xf32>
    %cst_102 = arith.constant dense<0.000000e+00> : vector<16xf32>
    %187 = vector.multi_reduction <add>, %186, %cst_102 [1] : vector<16x32xf32> to vector<16xf32>
    %188 = vector.shape_cast %187 : vector<16xf32> to vector<16x1xf32>
    %cst_103 = arith.constant 3.200000e+01 : f32
    %189 = vector.broadcast %cst_103 : f32 to vector<16x1xf32>
    %190 = arith.divf %188, %189 : vector<16x1xf32>
    %191 = vector.broadcast %183 : vector<16x1xf32> to vector<16x32xf32>
    %192 = arith.subf %175, %191 : vector<16x32xf32>
    %cst_104 = arith.constant 9.99999974E-6 : f32
    %193 = vector.broadcast %cst_104 : f32 to vector<16x1xf32>
    %194 = arith.addf %190, %193 : vector<16x1xf32>
    %195 = math.rsqrt %194 : vector<16x1xf32>
    %196 = vector.broadcast %195 : vector<16x1xf32> to vector<16x32xf32>
    %197 = arith.mulf %192, %196 : vector<16x32xf32>
    %198 = vector.broadcast %177 : vector<1x32xf32> to vector<16x32xf32>
    %199 = arith.mulf %197, %198 : vector<16x32xf32>
    %200 = vector.broadcast %179 : vector<1x32xf32> to vector<16x32xf32>
    %201 = arith.addf %199, %200 : vector<16x32xf32>
    %202 = arith.truncf %201 : vector<16x32xf32> to vector<16x32xbf16>
    %c0_105 = arith.constant 0 : index
    %c0_106 = arith.constant 0 : index
    %c0_107 = arith.constant 0 : index
    %203 = vector.load %arg10[%c0_105, %c0_106, %c0_107] : memref<1x32x64xbf16, #tpu.memory_space<vmem>>, vector<1x32x64xbf16>
    %204 = vector.shape_cast %203 : vector<1x32x64xbf16> to vector<32x64xbf16>
    %cst_108 = arith.constant dense<0.000000e+00> : vector<16x64xf32>
    %205 = tpu.matmul %202, %204, %cst_108 {dimension_numbers = #tpu.dot_dimension_numbers<[1], [0], [0], [1], [0, 0, 1, 1], [], []>} : vector<16x32xbf16>, vector<32x64xbf16>, vector<16x64xf32> -> vector<16x64xf32>
    %c0_109 = arith.constant 0 : index
    %c0_110 = arith.constant 0 : index
    %c0_111 = arith.constant 0 : index
    %206 = vector.load %arg11[%c0_109, %c0_110, %c0_111] : memref<1x1x64xf32, #tpu.memory_space<vmem>>, vector<1x1x64xf32>
    %207 = vector.shape_cast %206 : vector<1x1x64xf32> to vector<1x64xf32>
    %208 = vector.broadcast %207 : vector<1x64xf32> to vector<16x64xf32>
    %209 = arith.addf %205, %208 : vector<16x64xf32>
    %210 = arith.mulf %209, %209 : vector<16x64xf32>
    %211 = arith.mulf %209, %210 : vector<16x64xf32>
    %cst_112 = arith.constant 4.471500e-02 : f32
    %212 = vector.broadcast %cst_112 : f32 to vector<16x64xf32>
    %213 = arith.mulf %212, %211 : vector<16x64xf32>
    %214 = arith.addf %209, %213 : vector<16x64xf32>
    %cst_113 = arith.constant 0.797884583 : f32
    %215 = vector.broadcast %cst_113 : f32 to vector<16x64xf32>
    %216 = arith.mulf %215, %214 : vector<16x64xf32>
    %217 = math.tanh %216 : vector<16x64xf32>
    %cst_114 = arith.constant 1.000000e+00 : f32
    %218 = vector.broadcast %cst_114 : f32 to vector<16x64xf32>
    %219 = arith.addf %218, %217 : vector<16x64xf32>
    %cst_115 = arith.constant 5.000000e-01 : f32
    %220 = vector.broadcast %cst_115 : f32 to vector<16x64xf32>
    %221 = arith.mulf %220, %219 : vector<16x64xf32>
    %222 = arith.mulf %209, %221 : vector<16x64xf32>
    %223 = arith.truncf %222 : vector<16x64xf32> to vector<16x64xbf16>
    %c0_116 = arith.constant 0 : index
    %c0_117 = arith.constant 0 : index
    %c0_118 = arith.constant 0 : index
    %224 = vector.load %arg12[%c0_116, %c0_117, %c0_118] : memref<1x64x32xbf16, #tpu.memory_space<vmem>>, vector<1x64x32xbf16>
    %225 = vector.shape_cast %224 : vector<1x64x32xbf16> to vector<64x32xbf16>
    %cst_119 = arith.constant dense<0.000000e+00> : vector<16x32xf32>
    %226 = tpu.matmul %223, %225, %cst_119 {dimension_numbers = #tpu.dot_dimension_numbers<[1], [0], [0], [1], [0, 0, 1, 1], [], []>} : vector<16x64xbf16>, vector<64x32xbf16>, vector<16x32xf32> -> vector<16x32xf32>
    %c0_120 = arith.constant 0 : index
    %c0_121 = arith.constant 0 : index
    %c0_122 = arith.constant 0 : index
    %227 = vector.load %arg13[%c0_120, %c0_121, %c0_122] : memref<1x1x32xf32, #tpu.memory_space<vmem>>, vector<1x1x32xf32>
    %228 = vector.shape_cast %227 : vector<1x1x32xf32> to vector<1x32xf32>
    %229 = vector.broadcast %228 : vector<1x32xf32> to vector<16x32xf32>
    %230 = arith.addf %226, %229 : vector<16x32xf32>
    %231 = arith.addf %175, %230 : vector<16x32xf32>
    %c0_123 = arith.constant 0 : index
    %c0_124 = arith.constant 0 : index
    %232 = vector.load %arg17[%c0_123, %c0_124] : memref<16x32xf32, #tpu.memory_space<vmem>>, vector<16x32xf32>
    tpu.vector_store %arg17[%c0_123, %c0_124], %231 {strides = array<i32>} : memref<16x32xf32, #tpu.memory_space<vmem>>, vector<16x32xf32>,
    %c1_i32 = arith.constant 1 : i32
    %233 = arith.cmpi eq, %arg1, %c1_i32 : i32
    %234 = arith.extui %233 : i1 to i32
    %c0_i32_125 = arith.constant 0 : i32
    %235 = arith.cmpi ne, %234, %c0_i32_125 : i32
    scf.if %235 {
      %c0_126 = arith.constant 0 : index
      %c0_127 = arith.constant 0 : index
      %236 = vector.load %arg14[%c0_126, %c0_127] : memref<1x32xf32, #tpu.memory_space<vmem>>, vector<1x32xf32>
      %c0_128 = arith.constant 0 : index
      %c0_129 = arith.constant 0 : index
      %237 = vector.load %arg15[%c0_128, %c0_129] : memref<1x32xf32, #tpu.memory_space<vmem>>, vector<1x32xf32>
      %cst_130 = arith.constant dense<0.000000e+00> : vector<16xf32>
      %238 = vector.multi_reduction <add>, %231, %cst_130 [1] : vector<16x32xf32> to vector<16xf32>
      %239 = vector.shape_cast %238 : vector<16xf32> to vector<16x1xf32>
      %cst_131 = arith.constant 3.200000e+01 : f32
      %240 = vector.broadcast %cst_131 : f32 to vector<16x1xf32>
      %241 = arith.divf %239, %240 : vector<16x1xf32>
      %242 = vector.broadcast %241 : vector<16x1xf32> to vector<16x32xf32>
      %243 = arith.subf %231, %242 : vector<16x32xf32>
      %244 = arith.mulf %243, %243 : vector<16x32xf32>
      %cst_132 = arith.constant dense<0.000000e+00> : vector<16xf32>
      %245 = vector.multi_reduction <add>, %244, %cst_132 [1] : vector<16x32xf32> to vector<16xf32>
      %246 = vector.shape_cast %245 : vector<16xf32> to vector<16x1xf32>
      %cst_133 = arith.constant 3.200000e+01 : f32
      %247 = vector.broadcast %cst_133 : f32 to vector<16x1xf32>
      %248 = arith.divf %246, %247 : vector<16x1xf32>
      %249 = vector.broadcast %241 : vector<16x1xf32> to vector<16x32xf32>
      %250 = arith.subf %231, %249 : vector<16x32xf32>
      %cst_134 = arith.constant 9.99999974E-6 : f32
      %251 = vector.broadcast %cst_134 : f32 to vector<16x1xf32>
      %252 = arith.addf %248, %251 : vector<16x1xf32>
      %253 = math.rsqrt %252 : vector<16x1xf32>
      %254 = vector.broadcast %253 : vector<16x1xf32> to vector<16x32xf32>
      %255 = arith.mulf %250, %254 : vector<16x32xf32>
      %256 = vector.broadcast %236 : vector<1x32xf32> to vector<16x32xf32>
      %257 = arith.mulf %255, %256 : vector<16x32xf32>
      %258 = vector.broadcast %237 : vector<1x32xf32> to vector<16x32xf32>
      %259 = arith.addf %257, %258 : vector<16x32xf32>
      %c0_135 = arith.constant 0 : index
      %c0_136 = arith.constant 0 : index
      %260 = vector.load %arg16[%c0_135, %c0_136] : memref<16x32xf32, #tpu.memory_space<vmem>>, vector<16x32xf32>
      tpu.vector_store %arg16[%c0_135, %c0_136], %259 {strides = array<i32>} : memref<16x32xf32, #tpu.memory_space<vmem>>, vector<16x32xf32>,
    } else {
    }
    return
  }
  func.func @transform_0(%arg0: i32, %arg1: i32) -> (i32, i32) {
    %c0_i32 = arith.constant 0 : i32
    %c0_i32_0 = arith.constant 0 : i32
    return %arg0, %c0_i32 : i32, i32
  }
  func.func @transform_1(%arg0: i32, %arg1: i32) -> (i32, i32, i32) {
    %c0_i32 = arith.constant 0 : i32
    %c0_i32_0 = arith.constant 0 : i32
    %c0_i32_1 = arith.constant 0 : i32
    return %arg1, %c0_i32, %c0_i32_0 : i32, i32, i32
  }
  func.func @transform_2(%arg0: i32, %arg1: i32) -> (i32, i32, i32) {
    %c0_i32 = arith.constant 0 : i32
    %c0_i32_0 = arith.constant 0 : i32
    %c0_i32_1 = arith.constant 0 : i32
    return %arg1, %c0_i32, %c0_i32_0 : i32, i32, i32
  }
  func.func @transform_3(%arg0: i32, %arg1: i32) -> (i32, i32, i32) {
    %c0_i32 = arith.constant 0 : i32
    %c0_i32_0 = arith.constant 0 : i32
    %c0_i32_1 = arith.constant 0 : i32
    return %arg1, %c0_i32, %c0_i32_0 : i32, i32, i32
  }
  func.func @transform_4(%arg0: i32, %arg1: i32) -> (i32, i32, i32) {
    %c0_i32 = arith.constant 0 : i32
    %c0_i32_0 = arith.constant 0 : i32
    %c0_i32_1 = arith.constant 0 : i32
    return %arg1, %c0_i32, %c0_i32_0 : i32, i32, i32
  }
  func.func @transform_5(%arg0: i32, %arg1: i32) -> (i32, i32, i32) {
    %c0_i32 = arith.constant 0 : i32
    %c0_i32_0 = arith.constant 0 : i32
    %c0_i32_1 = arith.constant 0 : i32
    return %arg1, %c0_i32, %c0_i32_0 : i32, i32, i32
  }
  func.func @transform_6(%arg0: i32, %arg1: i32) -> (i32, i32, i32) {
    %c0_i32 = arith.constant 0 : i32
    %c0_i32_0 = arith.constant 0 : i32
    %c0_i32_1 = arith.constant 0 : i32
    return %arg1, %c0_i32, %c0_i32_0 : i32, i32, i32
  }
  func.func @transform_7(%arg0: i32, %arg1: i32) -> (i32, i32, i32) {
    %c0_i32 = arith.constant 0 : i32
    %c0_i32_0 = arith.constant 0 : i32
    %c0_i32_1 = arith.constant 0 : i32
    return %arg1, %c0_i32, %c0_i32_0 : i32, i32, i32
  }
  func.func @transform_8(%arg0: i32, %arg1: i32) -> (i32, i32, i32) {
    %c0_i32 = arith.constant 0 : i32
    %c0_i32_0 = arith.constant 0 : i32
    %c0_i32_1 = arith.constant 0 : i32
    return %arg1, %c0_i32, %c0_i32_0 : i32, i32, i32
  }
  func.func @transform_9(%arg0: i32, %arg1: i32) -> (i32, i32, i32) {
    %c0_i32 = arith.constant 0 : i32
    %c0_i32_0 = arith.constant 0 : i32
    %c0_i32_1 = arith.constant 0 : i32
    return %arg1, %c0_i32, %c0_i32_0 : i32, i32, i32
  }
  func.func @transform_10(%arg0: i32, %arg1: i32) -> (i32, i32, i32) {
    %c0_i32 = arith.constant 0 : i32
    %c0_i32_0 = arith.constant 0 : i32
    %c0_i32_1 = arith.constant 0 : i32
    return %arg1, %c0_i32, %c0_i32_0 : i32, i32, i32
  }
  func.func @transform_11(%arg0: i32, %arg1: i32) -> (i32, i32, i32) {
    %c0_i32 = arith.constant 0 : i32
    %c0_i32_0 = arith.constant 0 : i32
    %c0_i32_1 = arith.constant 0 : i32
    return %arg1, %c0_i32, %c0_i32_0 : i32, i32, i32
  }
  func.func @transform_12(%arg0: i32, %arg1: i32) -> (i32, i32) {
    %c0_i32 = arith.constant 0 : i32
    %c0_i32_0 = arith.constant 0 : i32
    %c0_i32_1 = arith.constant 0 : i32
    return %c0_i32, %c0_i32_0 : i32, i32
  }
  func.func @transform_13(%arg0: i32, %arg1: i32) -> (i32, i32) {
    %c0_i32 = arith.constant 0 : i32
    %c0_i32_0 = arith.constant 0 : i32
    %c0_i32_1 = arith.constant 0 : i32
    return %c0_i32, %c0_i32_0 : i32, i32
  }
  func.func @transform_14(%arg0: i32, %arg1: i32) -> (i32, i32) {
    %c0_i32 = arith.constant 0 : i32
    %c0_i32_0 = arith.constant 0 : i32
    return %arg0, %c0_i32 : i32, i32
  }
}

</mosaic_0001>

<llo_original>
// kernel: tpu_custom_call.1
$region0: #{tpu_custom_call.1}
  #allocation0 [shape = 'u32[]', space=smem, size = 0x4, offset = 0x4, fixed_abs, tag = 'smem constant byte address 0x4 - core index']
  #allocation1 [shape = 'u32[144,128]{1,0:T(1,128)}', space=vmem, size = 0x12000, scoped, tag = 'internal scratch']
  #allocation2 [shape = 'f32[16,32]{1,0:T(8,128)}', space=vmem, size = 0x2000, scoped, tag = 'scratch operand']
  #allocation3 [shape = 'bf16[16,96]{1,0:T(16,128)(2,1)}', space=vmem, size = 0x1000, scoped, tag = 'scratch operand']
  %s0 = inlined_call_operand.hbm [shape: f32[16,32], index: 0, kind: input, shape index: {}]
  %s1 = inlined_call_operand.vmem [shape: f32[2,1,32], index: 1, kind: input, shape index: {}]
  %s2 = inlined_call_operand.vmem [shape: f32[2,1,32], index: 2, kind: input, shape index: {}]
  %s3 = inlined_call_operand.vmem [shape: bf16[2,32,96], index: 3, kind: input, shape index: {}]
  %s4 = inlined_call_operand.vmem [shape: bf16[2,32,32], index: 4, kind: input, shape index: {}]
  %s5 = inlined_call_operand.hbm [shape: f32[2,1,32], index: 5, kind: input, shape index: {}]
  %s6 = inlined_call_operand.hbm [shape: f32[2,1,32], index: 6, kind: input, shape index: {}]
  %s7 = inlined_call_operand.hbm [shape: f32[2,1,32], index: 7, kind: input, shape index: {}]
  %s8 = inlined_call_operand.vmem [shape: bf16[2,32,64], index: 8, kind: input, shape index: {}]
  %s9 = inlined_call_operand.hbm [shape: f32[2,1,64], index: 9, kind: input, shape index: {}]
  %s10 = inlined_call_operand.vmem [shape: bf16[2,64,32], index: 10, kind: input, shape index: {}]
  %s11 = inlined_call_operand.vmem [shape: f32[2,1,32], index: 11, kind: input, shape index: {}]
  %s12 = inlined_call_operand.vmem [shape: f32[1,32], index: 12, kind: input, shape index: {}]
  %s13 = inlined_call_operand.vmem [shape: f32[1,32], index: 13, kind: input, shape index: {}]
  %s14 = inlined_call_operand.hbm [shape: f32[16,32], index: 14, kind: output, shape index: {}]
  %s15 = sld [smem:[#allocation0]]
  $region117: #{tpu_custom_call.1} parent=0
    _
  %s17 = ssub.s32 1, %s15
  %s18 = scalar_select 0, %s17, %s15
  $region1: #{tpu_custom_call.1} parent=0
    #allocation4 [shape = 'u8[8192]{0}', space=vmem, size = 0x2000, scoped, tag = 'input window, operand 0, single buffered']
    #allocation5 [shape = 's32[2]{0}', space=sflag, size = 0x8, scoped, tag = 'scoped memory for tpu_custom_call.1']
    #allocation6 [shape = 's32[2]{0}', space=sflag, size = 0x8, scoped, tag = 'scoped memory for tpu_custom_call.1']
    #allocation7 [shape = 'u8[1024]{0}', space=vmem, size = 0x400, scoped, tag = 'input window, operand 5']
    #allocation8 [shape = 's32[2]{0}', space=sflag, size = 0x8, scoped, tag = 'scoped memory for tpu_custom_call.1']
    #allocation9 [shape = 'u8[1024]{0}', space=vmem, size = 0x400, scoped, tag = 'input window, operand 6']
    #allocation10 [shape = 'u8[1024]{0}', space=vmem, size = 0x400, scoped, tag = 'input window, operand 7']
    #allocation11 [shape = 's32[2]{0}', space=sflag, size = 0x8, scoped, tag = 'scoped memory for tpu_custom_call.1']
    #allocation12 [shape = 'u8[1024]{0}', space=vmem, size = 0x400, scoped, tag = 'input window, operand 9']
    #allocation13 [shape = 'u8[8192]{0}', space=vmem, size = 0x2000, scoped, tag = 'output window, operand 0, single buffered']
    %19 = vsyncpa [#allocation5], 0
    %20 = vsyncpa [#allocation8], 0
    %s21 = scalar_lea.sflag [#allocation8], 1
    %22 = vsyncpa %s21, 0
    %23 = vsyncpa [#allocation11], 0
    %s24 = scalar_lea.sflag [#allocation11], 1
    %25 = vsyncpa %s24, 0
    %26 = vsyncpa [#allocation6], 0
    loop: start=0, step=1, limit=4
    $region2: #{tpu_custom_call.1} parent=1 // loop_pre_header
      _
    $region3: #{tpu_custom_call.1} parent=1 // loop_header
      %s28 = sphi 0, %s32
      %p29 = scmp.ge.s32.totalorder %s28, 4
      %s35 = sphi 0, %s47
      %s36 = sphi 0, %s43
      %s37 = sphi 0, %s35
      %s38 = sphi 0, %s36
      %s39 = sphi 0, %s37
      %s40 = sphi 0, %s38
      %s50 = sphi 0, %s52
      %s53 = sphi 0, %s50
      %s54 = sphi 0, %s53
      %s70 = sphi 0, %s54
      %s76 = sphi 0, %s78
      %s79 = sphi 0, %s76
      %s80 = sphi 0, %s79
      %s96 = sphi 0, %s80
      %s102 = sphi 0, %s104
      %s105 = sphi 0, %s102
      %s106 = sphi 0, %s105
      %s122 = sphi 0, %s106
      %s128 = sphi 0, %s130
      %s131 = sphi 0, %s128
      %s132 = sphi 0, %s131
      %s148 = sphi 0, %s132
      %s154 = sphi 0, %s156
      %s157 = sphi 0, %s154
      %s158 = sphi 0, %s157
      %s174 = sphi 0, %s158
      %s180 = sphi 0, %s182
      %s183 = sphi 0, %s180
      %s184 = sphi 0, %s183
      %s200 = sphi 0, %s184
      %s206 = sphi 0, %s208
      %s209 = sphi 0, %s206
      %s210 = sphi 0, %s209
      %s226 = sphi 0, %s210
      %s232 = sphi 0, %s234
      %s235 = sphi 0, %s232
      %s236 = sphi 0, %s235
      %s252 = sphi 0, %s236
      %s258 = sphi 0, %s260
      %s261 = sphi 0, %s258
      %s262 = sphi 0, %s261
      %s278 = sphi 0, %s262
      %s284 = sphi 0, %s286
      %s287 = sphi 0, %s284
      %s288 = sphi 0, %s287
      %s304 = sphi 0, %s288
      %s310 = sphi 0, %s312
      %s313 = sphi 0, %s310
      %s314 = sphi 0, %s313
      %s330 = sphi 0, %s314
      %s336 = sphi 0, %s338
      %s339 = sphi 0, %s336
      %s340 = sphi 0, %s339
      %s356 = sphi 0, %s340
      %s360 = sphi 0, %s360
      %s362 = sphi 0, %s360
      %s363 = sphi 0, %s362
      %s377 = sphi 0, %s363
      %s381 = sphi 0, %s381
      %s383 = sphi 0, %s381
      %s384 = sphi 0, %s383
      %s398 = sphi 0, %s384
      %s404 = sphi 0, %s406
      %s407 = sphi 0, %s404
      %s408 = sphi 0, %s407
      %s424 = sphi 0, %s408
    $region4: #{tpu_custom_call.1} parent=1 // loop_header_branch
      %31 = sbr.rel (%p29) target = $region8
    $region5: #{tpu_custom_call.1} parent=1 // loop_body
      %s33 = ssub.s32 %s28, 1
      %s34 = ssub.s32 %s28, 2
      %s41 = sadd.s32 1, %s36
      %p42 = scmp.ge.s32.totalorder %s41, 2
      %s43 = scalar_select %p42, 0, %s41
      %s44 = sadd.s32 1, %s35
      %s45 = scalar_select %p42, %s44, %s35
      %p46 = scmp.ge.s32.totalorder %s45, 1
      %s47 = scalar_select %p46, 0, %s45
      %s48 = ssub.s32 %s35, %s47
      %p49 = scmp.eq.s32.totalorder %s48, 0
      %s51 = sadd.s32 %s50, 1
      %s52 = scalar_select %p49, %s50, %s51
      %p55 = pneg %p49
      %p56 = scmp.eq.s32.totalorder %s28, 1
      %p57 = por %p55, %p56
      %p58 = scmp.ne.s32.totalorder %s50, %s53
      %p59 = scmp.eq.s32.totalorder %s28, 0
      %p60 = por %p58, %p59
      %p61 = scmp.ne.s32.totalorder %s50, %s53
      %p62 = scmp.eq.s32.totalorder %s33, 1
      %p63 = por %p61, %p62
      %p64 = scmp.ne.s32.totalorder %s53, %s54
      %p65 = scmp.eq.s32.totalorder %s33, 0
      %p66 = por %p64, %p65
      %p67 = scmp.ne.s32.totalorder %s53, %s54
      %p68 = scmp.eq.s32.totalorder %s34, 1
      %p69 = por %p67, %p68
      %p71 = scmp.ne.s32.totalorder %s54, %s70
      %p72 = scmp.eq.s32.totalorder %s34, 0
      %p73 = por %p71, %p72
      %s74 = ssub.s32 %s36, %s43
      %p75 = scmp.eq.s32.totalorder %s74, 0
      %s77 = sadd.s32 %s76, 1
      %s78 = scalar_select %p75, %s76, %s77
      %p81 = pneg %p75
      %p82 = scmp.eq.s32.totalorder %s28, 1
      %p83 = por %p81, %p82
      %p84 = scmp.ne.s32.totalorder %s76, %s79
      %p85 = scmp.eq.s32.totalorder %s28, 0
      %p86 = por %p84, %p85
      %p87 = scmp.ne.s32.totalorder %s76, %s79
      %p88 = scmp.eq.s32.totalorder %s33, 1
      %p89 = por %p87, %p88
      %p90 = scmp.ne.s32.totalorder %s79, %s80
      %p91 = scmp.eq.s32.totalorder %s33, 0
      %p92 = por %p90, %p91
      %p93 = scmp.ne.s32.totalorder %s79, %s80
      %p94 = scmp.eq.s32.totalorder %s34, 1
      %p95 = por %p93, %p94
      %p97 = scmp.ne.s32.totalorder %s80, %s96
      %p98 = scmp.eq.s32.totalorder %s34, 0
      %p99 = por %p97, %p98
      %s100 = ssub.s32 %s36, %s43
      %p101 = scmp.eq.s32.totalorder %s100, 0
      %s103 = sadd.s32 %s102, 1
      %s104 = scalar_select %p101, %s102, %s103
      %p107 = pneg %p101
      %p108 = scmp.eq.s32.totalorder %s28, 1
      %p109 = por %p107, %p108
      %p110 = scmp.ne.s32.totalorder %s102, %s105
      %p111 = scmp.eq.s32.totalorder %s28, 0
      %p112 = por %p110, %p111
      %p113 = scmp.ne.s32.totalorder %s102, %s105
      %p114 = scmp.eq.s32.totalorder %s33, 1
      %p115 = por %p113, %p114
      %p116 = scmp.ne.s32.totalorder %s105, %s106
      %p117 = scmp.eq.s32.totalorder %s33, 0
      %p118 = por %p116, %p117
      %p119 = scmp.ne.s32.totalorder %s105, %s106
      %p120 = scmp.eq.s32.totalorder %s34, 1
      %p121 = por %p119, %p120
      %p123 = scmp.ne.s32.totalorder %s106, %s122
      %p124 = scmp.eq.s32.totalorder %s34, 0
      %p125 = por %p123, %p124
      %s126 = ssub.s32 %s36, %s43
      %p127 = scmp.eq.s32.totalorder %s126, 0
      %s129 = sadd.s32 %s128, 1
      %s130 = scalar_select %p127, %s128, %s129
      %p133 = pneg %p127
      %p134 = scmp.eq.s32.totalorder %s28, 1
      %p135 = por %p133, %p134
      %p136 = scmp.ne.s32.totalorder %s128, %s131
      %p137 = scmp.eq.s32.totalorder %s28, 0
      %p138 = por %p136, %p137
      %p139 = scmp.ne.s32.totalorder %s128, %s131
      %p140 = scmp.eq.s32.totalorder %s33, 1
      %p141 = por %p139, %p140
      %p142 = scmp.ne.s32.totalorder %s131, %s132
      %p143 = scmp.eq.s32.totalorder %s33, 0
      %p144 = por %p142, %p143
      %p145 = scmp.ne.s32.totalorder %s131, %s132
      %p146 = scmp.eq.s32.totalorder %s34, 1
      %p147 = por %p145, %p146
      %p149 = scmp.ne.s32.totalorder %s132, %s148
      %p150 = scmp.eq.s32.totalorder %s34, 0
      %p151 = por %p149, %p150
      %s152 = ssub.s32 %s36, %s43
      %p153 = scmp.eq.s32.totalorder %s152, 0
      %s155 = sadd.s32 %s154, 1
      %s156 = scalar_select %p153, %s154, %s155
      %p159 = pneg %p153
      %p160 = scmp.eq.s32.totalorder %s28, 1
      %p161 = por %p159, %p160
      %p162 = scmp.ne.s32.totalorder %s154, %s157
      %p163 = scmp.eq.s32.totalorder %s28, 0
      %p164 = por %p162, %p163
      %p165 = scmp.ne.s32.totalorder %s154, %s157
      %p166 = scmp.eq.s32.totalorder %s33, 1
      %p167 = por %p165, %p166
      %p168 = scmp.ne.s32.totalorder %s157, %s158
      %p169 = scmp.eq.s32.totalorder %s33, 0
      %p170 = por %p168, %p169
      %p171 = scmp.ne.s32.totalorder %s157, %s158
      %p172 = scmp.eq.s32.totalorder %s34, 1
      %p173 = por %p171, %p172
      %p175 = scmp.ne.s32.totalorder %s158, %s174
      %p176 = scmp.eq.s32.totalorder %s34, 0
      %p177 = por %p175, %p176
      %s178 = ssub.s32 %s36, %s43
      %p179 = scmp.eq.s32.totalorder %s178, 0
      %s181 = sadd.s32 %s180, 1
      %s182 = scalar_select %p179, %s180, %s181
      %p185 = pneg %p179
      %p186 = scmp.eq.s32.totalorder %s28, 1
      %p187 = por %p185, %p186
      %p188 = scmp.ne.s32.totalorder %s180, %s183
      %p189 = scmp.eq.s32.totalorder %s28, 0
      %p190 = por %p188, %p189
      %p191 = scmp.ne.s32.totalorder %s180, %s183
      %p192 = scmp.eq.s32.totalorder %s33, 1
      %p193 = por %p191, %p192
      %p194 = scmp.ne.s32.totalorder %s183, %s184
      %p195 = scmp.eq.s32.totalorder %s33, 0
      %p196 = por %p194, %p195
      %p197 = scmp.ne.s32.totalorder %s183, %s184
      %p198 = scmp.eq.s32.totalorder %s34, 1
      %p199 = por %p197, %p198
      %p201 = scmp.ne.s32.totalorder %s184, %s200
      %p202 = scmp.eq.s32.totalorder %s34, 0
      %p203 = por %p201, %p202
      %s204 = ssub.s32 %s36, %s43
      %p205 = scmp.eq.s32.totalorder %s204, 0
      %s207 = sadd.s32 %s206, 1
      %s208 = scalar_select %p205, %s206, %s207
      %p211 = pneg %p205
      %p212 = scmp.eq.s32.totalorder %s28, 1
      %p213 = por %p211, %p212
      %p214 = scmp.ne.s32.totalorder %s206, %s209
      %p215 = scmp.eq.s32.totalorder %s28, 0
      %p216 = por %p214, %p215
      %p217 = scmp.ne.s32.totalorder %s206, %s209
      %p218 = scmp.eq.s32.totalorder %s33, 1
      %p219 = por %p217, %p218
      %p220 = scmp.ne.s32.totalorder %s209, %s210
      %p221 = scmp.eq.s32.totalorder %s33, 0
      %p222 = por %p220, %p221
      %p223 = scmp.ne.s32.totalorder %s209, %s210
      %p224 = scmp.eq.s32.totalorder %s34, 1
      %p225 = por %p223, %p224
      %p227 = scmp.ne.s32.totalorder %s210, %s226
      %p228 = scmp.eq.s32.totalorder %s34, 0
      %p229 = por %p227, %p228
      %s230 = ssub.s32 %s36, %s43
      %p231 = scmp.eq.s32.totalorder %s230, 0
      %s233 = sadd.s32 %s232, 1
      %s234 = scalar_select %p231, %s232, %s233
      %p237 = pneg %p231
      %p238 = scmp.eq.s32.totalorder %s28, 1
      %p239 = por %p237, %p238
      %p240 = scmp.ne.s32.totalorder %s232, %s235
      %p241 = scmp.eq.s32.totalorder %s28, 0
      %p242 = por %p240, %p241
      %p243 = scmp.ne.s32.totalorder %s232, %s235
      %p244 = scmp.eq.s32.totalorder %s33, 1
      %p245 = por %p243, %p244
      %p246 = scmp.ne.s32.totalorder %s235, %s236
      %p247 = scmp.eq.s32.totalorder %s33, 0
      %p248 = por %p246, %p247
      %p249 = scmp.ne.s32.totalorder %s235, %s236
      %p250 = scmp.eq.s32.totalorder %s34, 1
      %p251 = por %p249, %p250
      %p253 = scmp.ne.s32.totalorder %s236, %s252
      %p254 = scmp.eq.s32.totalorder %s34, 0
      %p255 = por %p253, %p254
      %s256 = ssub.s32 %s36, %s43
      %p257 = scmp.eq.s32.totalorder %s256, 0
      %s259 = sadd.s32 %s258, 1
      %s260 = scalar_select %p257, %s258, %s259
      %p263 = pneg %p257
      %p264 = scmp.eq.s32.totalorder %s28, 1
      %p265 = por %p263, %p264
      %p266 = scmp.ne.s32.totalorder %s258, %s261
      %p267 = scmp.eq.s32.totalorder %s28, 0
      %p268 = por %p266, %p267
      %p269 = scmp.ne.s32.totalorder %s258, %s261
      %p270 = scmp.eq.s32.totalorder %s33, 1
      %p271 = por %p269, %p270
      %p272 = scmp.ne.s32.totalorder %s261, %s262
      %p273 = scmp.eq.s32.totalorder %s33, 0
      %p274 = por %p272, %p273
      %p275 = scmp.ne.s32.totalorder %s261, %s262
      %p276 = scmp.eq.s32.totalorder %s34, 1
      %p277 = por %p275, %p276
      %p279 = scmp.ne.s32.totalorder %s262, %s278
      %p280 = scmp.eq.s32.totalorder %s34, 0
      %p281 = por %p279, %p280
      %s282 = ssub.s32 %s36, %s43
      %p283 = scmp.eq.s32.totalorder %s282, 0
      %s285 = sadd.s32 %s284, 1
      %s286 = scalar_select %p283, %s284, %s285
      %p289 = pneg %p283
      %p290 = scmp.eq.s32.totalorder %s28, 1
      %p291 = por %p289, %p290
      %p292 = scmp.ne.s32.totalorder %s284, %s287
      %p293 = scmp.eq.s32.totalorder %s28, 0
      %p294 = por %p292, %p293
      %p295 = scmp.ne.s32.totalorder %s284, %s287
      %p296 = scmp.eq.s32.totalorder %s33, 1
      %p297 = por %p295, %p296
      %p298 = scmp.ne.s32.totalorder %s287, %s288
      %p299 = scmp.eq.s32.totalorder %s33, 0
      %p300 = por %p298, %p299
      %p301 = scmp.ne.s32.totalorder %s287, %s288
      %p302 = scmp.eq.s32.totalorder %s34, 1
      %p303 = por %p301, %p302
      %p305 = scmp.ne.s32.totalorder %s288, %s304
      %p306 = scmp.eq.s32.totalorder %s34, 0
      %p307 = por %p305, %p306
      %s308 = ssub.s32 %s36, %s43
      %p309 = scmp.eq.s32.totalorder %s308, 0
      %s311 = sadd.s32 %s310, 1
      %s312 = scalar_select %p309, %s310, %s311
      %p315 = pneg %p309
      %p316 = scmp.eq.s32.totalorder %s28, 1
      %p317 = por %p315, %p316
      %p318 = scmp.ne.s32.totalorder %s310, %s313
      %p319 = scmp.eq.s32.totalorder %s28, 0
      %p320 = por %p318, %p319
      %p321 = scmp.ne.s32.totalorder %s310, %s313
      %p322 = scmp.eq.s32.totalorder %s33, 1
      %p323 = por %p321, %p322
      %p324 = scmp.ne.s32.totalorder %s313, %s314
      %p325 = scmp.eq.s32.totalorder %s33, 0
      %p326 = por %p324, %p325
      %p327 = scmp.ne.s32.totalorder %s313, %s314
      %p328 = scmp.eq.s32.totalorder %s34, 1
      %p329 = por %p327, %p328
      %p331 = scmp.ne.s32.totalorder %s314, %s330
      %p332 = scmp.eq.s32.totalorder %s34, 0
      %p333 = por %p331, %p332
      %s334 = ssub.s32 %s36, %s43
      %p335 = scmp.eq.s32.totalorder %s334, 0
      %s337 = sadd.s32 %s336, 1
      %s338 = scalar_select %p335, %s336, %s337
      %p341 = pneg %p335
      %p342 = scmp.eq.s32.totalorder %s28, 1
      %p343 = por %p341, %p342
      %p344 = scmp.ne.s32.totalorder %s336, %s339
      %p345 = scmp.eq.s32.totalorder %s28, 0
      %p346 = por %p344, %p345
      %p347 = scmp.ne.s32.totalorder %s336, %s339
      %p348 = scmp.eq.s32.totalorder %s33, 1
      %p349 = por %p347, %p348
      %p350 = scmp.ne.s32.totalorder %s339, %s340
      %p351 = scmp.eq.s32.totalorder %s33, 0
      %p352 = por %p350, %p351
      %p353 = scmp.ne.s32.totalorder %s339, %s340
      %p354 = scmp.eq.s32.totalorder %s34, 1
      %p355 = por %p353, %p354
      %p357 = scmp.ne.s32.totalorder %s340, %s356
      %p358 = scmp.eq.s32.totalorder %s34, 0
      %p359 = por %p357, %p358
      %s361 = sadd.s32 %s360, 1
      %p364 = scmp.eq.s32.totalorder %s28, 1
      %p365 = scmp.ne.s32.totalorder %s360, %s362
      %p366 = scmp.eq.s32.totalorder %s28, 0
      %p367 = por %p365, %p366
      %p368 = scmp.ne.s32.totalorder %s360, %s362
      %p369 = scmp.eq.s32.totalorder %s33, 1
      %p370 = por %p368, %p369
      %p371 = scmp.ne.s32.totalorder %s362, %s363
      %p372 = scmp.eq.s32.totalorder %s33, 0
      %p373 = por %p371, %p372
      %p374 = scmp.ne.s32.totalorder %s362, %s363
      %p375 = scmp.eq.s32.totalorder %s34, 1
      %p376 = por %p374, %p375
      %p378 = scmp.ne.s32.totalorder %s363, %s377
      %p379 = scmp.eq.s32.totalorder %s34, 0
      %p380 = por %p378, %p379
      %s382 = sadd.s32 %s381, 1
      %p385 = scmp.eq.s32.totalorder %s28, 1
      %p386 = scmp.ne.s32.totalorder %s381, %s383
      %p387 = scmp.eq.s32.totalorder %s28, 0
      %p388 = por %p386, %p387
      %p389 = scmp.ne.s32.totalorder %s381, %s383
      %p390 = scmp.eq.s32.totalorder %s33, 1
      %p391 = por %p389, %p390
      %p392 = scmp.ne.s32.totalorder %s383, %s384
      %p393 = scmp.eq.s32.totalorder %s33, 0
      %p394 = por %p392, %p393
      %p395 = scmp.ne.s32.totalorder %s383, %s384
      %p396 = scmp.eq.s32.totalorder %s34, 1
      %p397 = por %p395, %p396
      %p399 = scmp.ne.s32.totalorder %s384, %s398
      %p400 = scmp.eq.s32.totalorder %s34, 0
      %p401 = por %p399, %p400
      %s402 = ssub.s32 %s35, %s47
      %p403 = scmp.eq.s32.totalorder %s402, 0
      %s405 = sadd.s32 %s404, 1
      %s406 = scalar_select %p403, %s404, %s405
      %p409 = pneg %p403
      %p410 = scmp.eq.s32.totalorder %s28, 1
      %p411 = por %p409, %p410
      %p412 = scmp.ne.s32.totalorder %s404, %s407
      %p413 = scmp.eq.s32.totalorder %s28, 0
      %p414 = por %p412, %p413
      %p415 = scmp.ne.s32.totalorder %s404, %s407
      %p416 = scmp.eq.s32.totalorder %s33, 1
      %p417 = por %p415, %p416
      %p418 = scmp.ne.s32.totalorder %s407, %s408
      %p419 = scmp.eq.s32.totalorder %s33, 0
      %p420 = por %p418, %p419
      %p421 = scmp.ne.s32.totalorder %s407, %s408
      %p422 = scmp.eq.s32.totalorder %s34, 1
      %p423 = por %p421, %p422
      %p425 = scmp.ne.s32.totalorder %s408, %s424
      %p426 = scmp.eq.s32.totalorder %s34, 0
      %p427 = por %p425, %p426
      %p428 = scmp.le.s32.totalorder 1, %s28
      %p429 = scmp.lt.s32.totalorder %s28, 3
      %p430 = pnand %p428, %p429
      %p431 = pneg %p430
      // Predicated region
      $region9: #{tpu_custom_call.1} parent=5 // pred_check
        _
      $region10: #{tpu_custom_call.1} parent=5 // pred_check_branch
        %433 = sbr.rel (%p430) target = $region12
      $region11: #{tpu_custom_call.1} parent=5 // pred_region
        %s434 = ssub.s32 %s28, 1
        // Predicated region
        $region13: #{tpu_custom_call.1} parent=11 // pred_check
          %p435 = pneg %p66
        $region14: #{tpu_custom_call.1} parent=11 // pred_check_branch
          %437 = sbr.rel (%p435) target = $region16
        $region15: #{tpu_custom_call.1} parent=11 // pred_region
          %s438 = smul.u32 2, %s37
          %s440 = ssub.s32 256, 256
          %441 = vsyncadd [#allocation5], %s440
          %s442 = smul.addr %s438, 128
          %s443 = scalar_lea.hbm %s0, %s442
          %s444 = sshll.u32 [#allocation4], 4
          %s445 = int_to_ptr.vmem [resolvable:$true] %s444
          %450 = dma.hbm_to_vmem [thread:$0]  %s443, 256, %s445, [#allocation5], 128, 128, 8
        $region16: #{tpu_custom_call.1} parent=11 // pred_fallthru
          _
        // Predicated region
        $region17: #{tpu_custom_call.1} parent=11 // pred_check
          %p451 = pneg %p373
        $region18: #{tpu_custom_call.1} parent=11 // pred_check_branch
          %453 = sbr.rel (%p451) target = $region20
        $region19: #{tpu_custom_call.1} parent=11 // pred_region
          _
        $region20: #{tpu_custom_call.1} parent=11 // pred_fallthru
          _
        // Predicated region
        $region21: #{tpu_custom_call.1} parent=11 // pred_check
          %p454 = pneg %p394
        $region22: #{tpu_custom_call.1} parent=11 // pred_check_branch
          %456 = sbr.rel (%p454) target = $region24
        $region23: #{tpu_custom_call.1} parent=11 // pred_region
          _
        $region24: #{tpu_custom_call.1} parent=11 // pred_fallthru
          _
      $region12: #{tpu_custom_call.1} parent=5 // pred_fallthru
        _
      %p457 = scmp.lt.s32.totalorder %s28, 2
      // Predicated region
      $region25: #{tpu_custom_call.1} parent=5 // pred_check
        %p458 = pneg %p457
      $region26: #{tpu_custom_call.1} parent=5 // pred_check_branch
        %460 = sbr.rel (%p458) target = $region28
      $region27: #{tpu_custom_call.1} parent=5 // pred_region
        // Predicated region
        $region29: #{tpu_custom_call.1} parent=27 // pred_check
          %p461 = pneg %p86
        $region30: #{tpu_custom_call.1} parent=27 // pred_check_branch
          %463 = sbr.rel (%p461) target = $region32
        $region31: #{tpu_custom_call.1} parent=27 // pred_region
          %p464 = scmp.lt.s32.totalorder %s36, 1
          %s465 = scalar_select %p464, %s36, 1
          %s466 = scalar_lea.vmem %s1, %s465
        $region32: #{tpu_custom_call.1} parent=27 // pred_fallthru
          _
        // Predicated region
        $region33: #{tpu_custom_call.1} parent=27 // pred_check
          %p467 = pneg %p112
        $region34: #{tpu_custom_call.1} parent=27 // pred_check_branch
          %469 = sbr.rel (%p467) target = $region36
        $region35: #{tpu_custom_call.1} parent=27 // pred_region
          %p470 = scmp.lt.s32.totalorder %s36, 1
          %s471 = scalar_select %p470, %s36, 1
          %s472 = scalar_lea.vmem %s2, %s471
        $region36: #{tpu_custom_call.1} parent=27 // pred_fallthru
          _
        // Predicated region
        $region37: #{tpu_custom_call.1} parent=27 // pred_check
          %p473 = pneg %p138
        $region38: #{tpu_custom_call.1} parent=27 // pred_check_branch
          %475 = sbr.rel (%p473) target = $region40
        $region39: #{tpu_custom_call.1} parent=27 // pred_region
          %p476 = scmp.lt.s32.totalorder %s36, 1
          %s477 = scalar_select %p476, %s36, 1
          %s478 = smul.addr %s477, 4
          %s479 = smul.addr %s478, 4
          %s480 = scalar_lea.vmem %s3, %s479
        $region40: #{tpu_custom_call.1} parent=27 // pred_fallthru
          _
        // Predicated region
        $region41: #{tpu_custom_call.1} parent=27 // pred_check
          %p481 = pneg %p164
        $region42: #{tpu_custom_call.1} parent=27 // pred_check_branch
          %483 = sbr.rel (%p481) target = $region44
        $region43: #{tpu_custom_call.1} parent=27 // pred_region
          %p484 = scmp.lt.s32.totalorder %s36, 1
          %s485 = scalar_select %p484, %s36, 1
          %s486 = smul.addr %s485, 4
          %s487 = smul.addr %s486, 4
          %s488 = scalar_lea.vmem %s4, %s487
        $region44: #{tpu_custom_call.1} parent=27 // pred_fallthru
          _
        // Predicated region
        $region45: #{tpu_custom_call.1} parent=27 // pred_check
          %p489 = pneg %p190
        $region46: #{tpu_custom_call.1} parent=27 // pred_check_branch
          %491 = sbr.rel (%p489) target = $region48
        $region47: #{tpu_custom_call.1} parent=27 // pred_region
          %s492 = sand.u32 %s28, 1
          %s493 = scalar_lea.sflag [#allocation8], %s492
          %s494 = sand.u32 %s180, 1
          %s495 = scalar_lea.vmem [#allocation7], %s494
          %s497 = ssub.s32 16, 16
          %498 = vsyncadd %s493, %s497
          %s499 = smul.addr %s36, 16
          %s500 = scalar_lea.hbm %s5, %s499
          %s502 = sshll.u32 %s495, 4
          %s503 = int_to_ptr.vmem [resolvable:$true] %s502
          %505 = dma.hbm_to_vmem [thread:$0]  %s500, 16, %s503, %s493
        $region48: #{tpu_custom_call.1} parent=27 // pred_fallthru
          _
        // Predicated region
        $region49: #{tpu_custom_call.1} parent=27 // pred_check
          %p506 = pneg %p216
        $region50: #{tpu_custom_call.1} parent=27 // pred_check_branch
          %508 = sbr.rel (%p506) target = $region52
        $region51: #{tpu_custom_call.1} parent=27 // pred_region
          %s509 = sand.u32 %s28, 1
          %s510 = scalar_lea.sflag [#allocation8], %s509
          %s511 = sand.u32 %s206, 1
          %s512 = scalar_lea.vmem [#allocation9], %s511
          %s514 = ssub.s32 16, 16
          %515 = vsyncadd %s510, %s514
          %s516 = smul.addr %s36, 16
          %s517 = scalar_lea.hbm %s6, %s516
          %s519 = sshll.u32 %s512, 4
          %s520 = int_to_ptr.vmem [resolvable:$true] %s519
          %522 = dma.hbm_to_vmem [thread:$0]  %s517, 16, %s520, %s510
        $region52: #{tpu_custom_call.1} parent=27 // pred_fallthru
          _
        // Predicated region
        $region53: #{tpu_custom_call.1} parent=27 // pred_check
          %p523 = pneg %p242
        $region54: #{tpu_custom_call.1} parent=27 // pred_check_branch
          %525 = sbr.rel (%p523) target = $region56
        $region55: #{tpu_custom_call.1} parent=27 // pred_region
          %s526 = sand.u32 %s28, 1
          %s527 = scalar_lea.sflag [#allocation11], %s526
          %s528 = sand.u32 %s232, 1
          %s529 = scalar_lea.vmem [#allocation10], %s528
          %s531 = ssub.s32 16, 16
          %532 = vsyncadd %s527, %s531
          %s533 = smul.addr %s36, 16
          %s534 = scalar_lea.hbm %s7, %s533
          %s536 = sshll.u32 %s529, 4
          %s537 = int_to_ptr.vmem [resolvable:$true] %s536
          %539 = dma.hbm_to_vmem [thread:$0]  %s534, 16, %s537, %s527
        $region56: #{tpu_custom_call.1} parent=27 // pred_fallthru
          _
        // Predicated region
        $region57: #{tpu_custom_call.1} parent=27 // pred_check
          %p540 = pneg %p268
        $region58: #{tpu_custom_call.1} parent=27 // pred_check_branch
          %542 = sbr.rel (%p540) target = $region60
        $region59: #{tpu_custom_call.1} parent=27 // pred_region
          %p543 = scmp.lt.s32.totalorder %s36, 1
          %s544 = scalar_select %p543, %s36, 1
          %s545 = smul.addr %s544, 4
          %s546 = smul.addr %s545, 4
          %s547 = scalar_lea.vmem %s8, %s546
        $region60: #{tpu_custom_call.1} parent=27 // pred_fallthru
          _
        // Predicated region
        $region61: #{tpu_custom_call.1} parent=27 // pred_check
          %p548 = pneg %p294
        $region62: #{tpu_custom_call.1} parent=27 // pred_check_branch
          %550 = sbr.rel (%p548) target = $region64
        $region63: #{tpu_custom_call.1} parent=27 // pred_region
          %s551 = sand.u32 %s28, 1
          %s552 = scalar_lea.sflag [#allocation11], %s551
          %s553 = sand.u32 %s284, 1
          %s554 = scalar_lea.vmem [#allocation12], %s553
          %s556 = ssub.s32 16, 16
          %557 = vsyncadd %s552, %s556
          %s558 = smul.addr %s36, 16
          %s559 = scalar_lea.hbm %s9, %s558
          %s561 = sshll.u32 %s554, 4
          %s562 = int_to_ptr.vmem [resolvable:$true] %s561
          %564 = dma.hbm_to_vmem [thread:$0]  %s559, 16, %s562, %s552
        $region64: #{tpu_custom_call.1} parent=27 // pred_fallthru
          _
        // Predicated region
        $region65: #{tpu_custom_call.1} parent=27 // pred_check
          %p565 = pneg %p320
        $region66: #{tpu_custom_call.1} parent=27 // pred_check_branch
          %567 = sbr.rel (%p565) target = $region68
        $region67: #{tpu_custom_call.1} parent=27 // pred_region
          %p568 = scmp.lt.s32.totalorder %s36, 1
          %s569 = scalar_select %p568, %s36, 1
          %s570 = smul.addr %s569, 8
          %s571 = smul.addr %s570, 4
          %s572 = scalar_lea.vmem %s10, %s571
        $region68: #{tpu_custom_call.1} parent=27 // pred_fallthru
          _
        // Predicated region
        $region69: #{tpu_custom_call.1} parent=27 // pred_check
          %p573 = pneg %p346
        $region70: #{tpu_custom_call.1} parent=27 // pred_check_branch
          %575 = sbr.rel (%p573) target = $region72
        $region71: #{tpu_custom_call.1} parent=27 // pred_region
          %p576 = scmp.lt.s32.totalorder %s36, 1
          %s577 = scalar_select %p576, %s36, 1
          %s578 = scalar_lea.vmem %s11, %s577
        $region72: #{tpu_custom_call.1} parent=27 // pred_fallthru
          _
      $region28: #{tpu_custom_call.1} parent=5 // pred_fallthru
        _
      %p579 = scmp.le.s32.totalorder 1, %s28
      %p580 = scmp.lt.s32.totalorder %s28, 3
      %p581 = pnand %p579, %p580
      %p582 = pneg %p581
      // Predicated region
      $region73: #{tpu_custom_call.1} parent=5 // pred_check
        _
      $region74: #{tpu_custom_call.1} parent=5 // pred_check_branch
        %584 = sbr.rel (%p581) target = $region76
      $region75: #{tpu_custom_call.1} parent=5 // pred_region
        %s585 = ssub.s32 %s28, 1
        // Predicated region
        $region77: #{tpu_custom_call.1} parent=75 // pred_check
          %p586 = pneg %p66
        $region78: #{tpu_custom_call.1} parent=75 // pred_check_branch
          %588 = sbr.rel (%p586) target = $region80
        $region79: #{tpu_custom_call.1} parent=75 // pred_region
          %589 = dma.done [#allocation5], 256
        $region80: #{tpu_custom_call.1} parent=75 // pred_fallthru
          _
        %s590 = sand.u32 %s33, 1
        %s591 = scalar_lea.sflag [#allocation8], %s590
        %s592 = sand.u32 %s183, 1
        %s593 = scalar_lea.vmem [#allocation7], %s592
        // Predicated region
        $region81: #{tpu_custom_call.1} parent=75 // pred_check
          %p594 = pneg %p196
        $region82: #{tpu_custom_call.1} parent=75 // pred_check_branch
          %596 = sbr.rel (%p594) target = $region84
        $region83: #{tpu_custom_call.1} parent=75 // pred_region
          %597 = dma.done %s591, 16
        $region84: #{tpu_custom_call.1} parent=75 // pred_fallthru
          _
        %s598 = sand.u32 %s33, 1
        %s599 = scalar_lea.sflag [#allocation8], %s598
        %s600 = sand.u32 %s209, 1
        %s601 = scalar_lea.vmem [#allocation9], %s600
        // Predicated region
        $region85: #{tpu_custom_call.1} parent=75 // pred_check
          %p602 = pneg %p222
        $region86: #{tpu_custom_call.1} parent=75 // pred_check_branch
          %604 = sbr.rel (%p602) target = $region88
        $region87: #{tpu_custom_call.1} parent=75 // pred_region
          %605 = dma.done %s599, 16
        $region88: #{tpu_custom_call.1} parent=75 // pred_fallthru
          _
        %s606 = sand.u32 %s33, 1
        %s607 = scalar_lea.sflag [#allocation11], %s606
        %s608 = sand.u32 %s235, 1
        %s609 = scalar_lea.vmem [#allocation10], %s608
        // Predicated region
        $region89: #{tpu_custom_call.1} parent=75 // pred_check
          %p610 = pneg %p248
        $region90: #{tpu_custom_call.1} parent=75 // pred_check_branch
          %612 = sbr.rel (%p610) target = $region92
        $region91: #{tpu_custom_call.1} parent=75 // pred_region
          %613 = dma.done %s607, 16
        $region92: #{tpu_custom_call.1} parent=75 // pred_fallthru
          _
        %s614 = sand.u32 %s33, 1
        %s615 = scalar_lea.sflag [#allocation11], %s614
        %s616 = sand.u32 %s287, 1
        %s617 = scalar_lea.vmem [#allocation12], %s616
        // Predicated region
        $region93: #{tpu_custom_call.1} parent=75 // pred_check
          %p618 = pneg %p300
        $region94: #{tpu_custom_call.1} parent=75 // pred_check_branch
          %620 = sbr.rel (%p618) target = $region96
        $region95: #{tpu_custom_call.1} parent=75 // pred_region
          %621 = dma.done %s615, 16
        $region96: #{tpu_custom_call.1} parent=75 // pred_fallthru
          _
        %p622 = pneg %p66
        %p623 = pneg %p63
        %p624 = scmp.lt.s32.totalorder %s38, 1
        %s625 = scalar_select %p624, %s38, 1
        %s626 = scalar_lea.vmem %s1, %s625
        %p627 = pneg %p92
        %p628 = pneg %p89
        %p629 = scmp.lt.s32.totalorder %s38, 1
        %s630 = scalar_select %p629, %s38, 1
        %s631 = scalar_lea.vmem %s2, %s630
        %p632 = pneg %p118
        %p633 = pneg %p115
        %p634 = scmp.lt.s32.totalorder %s38, 1
        %s635 = scalar_select %p634, %s38, 1
        %s636 = smul.addr %s635, 4
        %s637 = smul.addr %s636, 4
        %s638 = scalar_lea.vmem %s3, %s637
        %p639 = pneg %p144
        %p640 = pneg %p141
        %p641 = scmp.lt.s32.totalorder %s38, 1
        %s642 = scalar_select %p641, %s38, 1
        %s643 = smul.addr %s642, 4
        %s644 = smul.addr %s643, 4
        %s645 = scalar_lea.vmem %s4, %s644
        %p646 = pneg %p170
        %p647 = pneg %p167
        %s648 = sand.u32 %s33, 1
        %s649 = scalar_lea.sflag [#allocation8], %s648
        %s650 = sand.u32 %s183, 1
        %s651 = scalar_lea.vmem [#allocation7], %s650
        %p652 = pneg %p196
        %p653 = pneg %p193
        %s654 = sand.u32 %s33, 1
        %s655 = scalar_lea.sflag [#allocation8], %s654
        %s656 = sand.u32 %s209, 1
        %s657 = scalar_lea.vmem [#allocation9], %s656
        %p658 = pneg %p222
        %p659 = pneg %p219
        %s660 = sand.u32 %s33, 1
        %s661 = scalar_lea.sflag [#allocation11], %s660
        %s662 = sand.u32 %s235, 1
        %s663 = scalar_lea.vmem [#allocation10], %s662
        %p664 = pneg %p248
        %p665 = pneg %p245
        %p666 = scmp.lt.s32.totalorder %s38, 1
        %s667 = scalar_select %p666, %s38, 1
        %s668 = smul.addr %s667, 4
        %s669 = smul.addr %s668, 4
        %s670 = scalar_lea.vmem %s8, %s669
        %p671 = pneg %p274
        %p672 = pneg %p271
        %s673 = sand.u32 %s33, 1
        %s674 = scalar_lea.sflag [#allocation11], %s673
        %s675 = sand.u32 %s287, 1
        %s676 = scalar_lea.vmem [#allocation12], %s675
        %p677 = pneg %p300
        %p678 = pneg %p297
        %p679 = scmp.lt.s32.totalorder %s38, 1
        %s680 = scalar_select %p679, %s38, 1
        %s681 = smul.addr %s680, 8
        %s682 = smul.addr %s681, 4
        %s683 = scalar_lea.vmem %s10, %s682
        %p684 = pneg %p326
        %p685 = pneg %p323
        %p686 = scmp.lt.s32.totalorder %s38, 1
        %s687 = scalar_select %p686, %s38, 1
        %s688 = scalar_lea.vmem %s11, %s687
        %p689 = pneg %p352
        %p690 = pneg %p349
        %p691 = pneg %p373
        %p692 = pneg %p370
        %p693 = pneg %p394
        %p694 = pneg %p391
        %p695 = pneg %p420
        %p696 = pneg %p417
        %s697 = smul.u32 2, %s37
        %p698 = scmp.lt.s32.totalorder %s38, 1
        %s699 = scalar_select %p698, %s38, 1
        %s700 = scalar_lea.vmem %s1, %s699
        %p701 = scmp.lt.s32.totalorder %s38, 1
        %s702 = scalar_select %p701, %s38, 1
        %s703 = scalar_lea.vmem %s2, %s702
        %p704 = scmp.lt.s32.totalorder %s38, 1
        %s705 = scalar_select %p704, %s38, 1
        %s706 = smul.addr %s705, 4
        %s707 = smul.addr %s706, 4
        %s708 = scalar_lea.vmem %s3, %s707
        %p709 = scmp.lt.s32.totalorder %s38, 1
        %s710 = scalar_select %p709, %s38, 1
        %s711 = smul.addr %s710, 4
        %s712 = smul.addr %s711, 4
        %s713 = scalar_lea.vmem %s4, %s712
        %p714 = scmp.lt.s32.totalorder %s38, 1
        %s715 = scalar_select %p714, %s38, 1
        %s716 = smul.addr %s715, 4
        %s717 = smul.addr %s716, 4
        %s718 = scalar_lea.vmem %s8, %s717
        %p719 = scmp.lt.s32.totalorder %s38, 1
        %s720 = scalar_select %p719, %s38, 1
        %s721 = smul.addr %s720, 8
        %s722 = smul.addr %s721, 4
        %s723 = scalar_lea.vmem %s10, %s722
        %p724 = scmp.lt.s32.totalorder %s38, 1
        %s725 = scalar_select %p724, %s38, 1
        %s726 = scalar_lea.vmem %s11, %s725
        %s727 = smul.u32 2, %s37
        %p729 = scmp.eq.s32.totalorder %s38, 0
        // Predicated region
        $region97: #{tpu_custom_call.1} parent=75 // pred_check
          %p730 = pneg %p729
        $region98: #{tpu_custom_call.1} parent=75 // pred_check_branch
          %732 = sbr.rel (%p730) target = $region100
        $region99: #{tpu_custom_call.1} parent=75 // pred_region
          %v733 = vld [vmem:[#allocation4] sm:$0xff]
          %v734 = vld [vmem:[#allocation4 + $0x8] sm:$0xff]
          %vm735 = vcmask 261120
          %736 = vst.msk [vmem:[#allocation2] sm:$0xff] %vm735, %v733
          %737 = vst.msk [vmem:[#allocation2 + $0x8] sm:$0xff] %vm735, %v734
        $region100: #{tpu_custom_call.1} parent=75 // pred_fallthru
          _
        %v738 = vld [vmem:[#allocation2] sm:$0xff]
        %v739 = vld [vmem:[#allocation2 + $0x8] sm:$0xff]
        %v740 = vld [vmem:[%s700] sm:$0x1]
        %v741 = vld [vmem:[%s703] sm:$0x1]
        %vm742 = vcmask 261120
        %v743 = vsel %vm742, %v738, 0.0
        %744 = vadd.xlane.f32.xlu0 %v743
        %v745 = vpop.xlane.xlu0 %744
        %v746 = vsel %vm742, %v739, 0.0
        %747 = vadd.xlane.f32.xlu0 %v746
        %v748 = vpop.xlane.xlu0 %747
        %v749 = vrcp.pop 32.0
        %v750 = vmul.f32 %v745, %v749
        %v751 = vmul.f32 %v748, %v749
        %v752 = vsub.f32 %v738, %v750
        %v753 = vsub.f32 %v739, %v751
        %v754 = vmul.f32 %v752, %v752
        %v755 = vmul.f32 %v753, %v753
        %v756 = vsel %vm742, %v754, 0.0
        %757 = vadd.xlane.f32.xlu0 %v756
        %v758 = vpop.xlane.xlu0 %757
        %v759 = vsel %vm742, %v755, 0.0
        %760 = vadd.xlane.f32.xlu0 %v759
        %v761 = vpop.xlane.xlu0 %760
        %v762 = vmul.f32 %v758, %v749
        %v763 = vmul.f32 %v761, %v749
        %v764 = vadd.f32 %v762, 1e-05
        %v765 = vadd.f32 %v763, 1e-05
        %v766 = vrsqrt.pop %v764
        %v767 = vrsqrt.pop %v765
        %v768 = vmul.f32 %v752, %v766
        %v769 = vmul.f32 %v753, %v767
        %v771 = vlaneseq
        %v772 = vshrl.u32 %v771, 7
        %v773 = vsub.s32 0, %v772
        %v774 = vrot.slane %v740, %v773
        %v776 = vmul.f32 %v768, %v774
        %v777 = vmul.f32 %v769, %v774
        %v779 = vlaneseq
        %v780 = vshrl.u32 %v779, 7
        %v781 = vsub.s32 0, %v780
        %v782 = vrot.slane %v741, %v781
        %v784 = vadd.f32 %v776, %v782
        %v785 = vadd.f32 %v777, %v782
        %v786 = vpack.c.bf16 %v785, %v784
        %v787 = vld [vmem:[%s708] sm:$0xf]
        %v788 = vld [vmem:[%s708 + $0x4] sm:$0xf]
        %v789 = vld [vmem:[%s708 + $0x8] sm:$0xf]
        %v790 = vld [vmem:[%s708 + $0xc] sm:$0xf]
        %v795 = vunpack.c.l.b16 %v787
        %v796 = vunpack.c.l.b16 %v788
        %v797 = vunpack.c.l.b16 %v789
        %v798 = vunpack.c.l.b16 %v790
        %v799 = vpack.c.b16 %v796, %v795
        %v800 = vpack.c.b16 %v798, %v797
        %v804 = vsel %vm742, %v786, 0
        %806 = vmatprep.subr.bf16.mxu0 0
        %807 = vmatpush1.bf16.msra.mxu0 %v799
        %808 = vmatprep.subr.bf16.mxu0 0
        %809 = vmatpush1.bf16.msra.mxu0 %v800
        %810 = vmatprep.subr.bf16.mxu0 0
        %811 = vmatpush1.bf16.msra.mxu0 0
        %812 = vmatprep.subr.bf16.mxu0 0
        %813 = vmatpush1.bf16.msra.mxu0 0
        %814 = vmatprep.subr.bf16.mxu0 0
        %815 = vmatpush1.bf16.msra.mxu0 0
        %816 = vmatprep.subr.bf16.mxu0 0
        %817 = vmatpush1.bf16.msra.mxu0 0
        %818 = vmatprep.subr.bf16.mxu0 0
        %819 = vmatpush1.bf16.msra.mxu0 0
        %820 = vmatprep.subr.bf16.mxu0 0
        %821 = vmatpush1.bf16.msra.mxu0 0
        %822 = vmatprep.subr.bf16.mxu0 0
        %823 = vmatpush1.bf16.msra.mxu0 0
        %824 = vmatprep.subr.bf16.mxu0 0
        %825 = vmatpush1.bf16.msra.mxu0 0
        %826 = vmatprep.subr.bf16.mxu0 0
        %827 = vmatpush1.bf16.msra.mxu0 0
        %828 = vmatprep.subr.bf16.mxu0 0
        %829 = vmatpush1.bf16.msra.mxu0 0
        %830 = vmatprep.subr.bf16.mxu0 0
        %831 = vmatpush1.bf16.msra.mxu0 0
        %832 = vmatprep.subr.bf16.mxu0 0
        %833 = vmatpush1.bf16.msra.mxu0 0
        %834 = vmatprep.subr.bf16.mxu0 0
        %835 = vmatpush1.bf16.msra.mxu0 0
        %836 = vmatprep.subr.bf16.mxu0 0
        %837 = vmatpush1.bf16.msra.mxu0 0
        %838 = vmatprep.mubr.bf16.mxu0 0
        %839 = vmatmul.mubr.bf16.gmra.mrb[0].mxu0 %v804
        %v840 = vpop.f32.mrb[0].mxu0
        %v841 = vadd.f32 0.0, %v840
        %v842 = vpop.f32.mrb[0].mxu0
        %v843 = vpop.f32.mrb[0].mxu0
        %v844 = vadd.f32 0.0, %v843
        %v845 = vpop.f32.mrb[0].mxu0
        %846 = vdwg.mxu0
        %v847 = vpack.c.bf16 %v844, %v841
        %vm848 = vcmask 785408
        %849 = vst.msk [vmem:[#allocation3] sm:$0xff] %vm848, %v847
        %v850 = vld [vmem:[#allocation3] sm:$0xf]
        %852 = vrot.lane.b32.xlu0 %v850, 96
        %v853 = vpop.permute.xlu0 %852
        %vm854 = vcmask 64512
        %v856 = vsel %vm854, %v850, 0
        %v859 = vsel %vm854, %v853, 0
        %861 = vmatprep.subr.bf16.mxu0 0
        %862 = vmatpush1.bf16.xpose.msra.mxu0 %v859
        %863 = vmatprep.subr.bf16.mxu0 0
        %864 = vmatpush1.bf16.xpose.msra.mxu0 0
        %865 = vmatprep.subr.bf16.mxu0 0
        %866 = vmatpush1.bf16.xpose.msra.mxu0 0
        %867 = vmatprep.subr.bf16.mxu0 0
        %868 = vmatpush1.bf16.xpose.msra.mxu0 0
        %869 = vmatprep.subr.bf16.mxu0 0
        %870 = vmatpush1.bf16.xpose.msra.mxu0 0
        %871 = vmatprep.subr.bf16.mxu0 0
        %872 = vmatpush1.bf16.xpose.msra.mxu0 0
        %873 = vmatprep.subr.bf16.mxu0 0
        %874 = vmatpush1.bf16.xpose.msra.mxu0 0
        %875 = vmatprep.subr.bf16.mxu0 0
        %876 = vmatpush1.bf16.xpose.msra.mxu0 0
        %877 = vmatprep.subr.bf16.mxu0 0
        %878 = vmatpush1.bf16.xpose.msra.mxu0 0
        %879 = vmatprep.subr.bf16.mxu0 0
        %880 = vmatpush1.bf16.xpose.msra.mxu0 0
        %881 = vmatprep.subr.bf16.mxu0 0
        %882 = vmatpush1.bf16.xpose.msra.mxu0 0
        %883 = vmatprep.subr.bf16.mxu0 0
        %884 = vmatpush1.bf16.xpose.msra.mxu0 0
        %885 = vmatprep.subr.bf16.mxu0 0
        %886 = vmatpush1.bf16.xpose.msra.mxu0 0
        %887 = vmatprep.subr.bf16.mxu0 0
        %888 = vmatpush1.bf16.xpose.msra.mxu0 0
        %889 = vmatprep.subr.bf16.mxu0 0
        %890 = vmatpush1.bf16.xpose.msra.mxu0 0
        %891 = vmatprep.subr.bf16.mxu0 0
        %892 = vmatpush1.bf16.xpose.msra.mxu0 0
        %893 = vmatprep.mubr.bf16.mxu0 0
        %894 = vmatmul.mubr.bf16.gmra.mrb[0].mxu0 %v856
        %v895 = vpop.f32.mrb[0].mxu0
        %v896 = vadd.f32 0.0, %v895
        %v897 = vpop.f32.mrb[0].mxu0
        %v898 = vpop.f32.mrb[0].mxu0
        %v899 = vpop.f32.mrb[0].mxu0
        %900 = vdwg.mxu0
        %v901 = vsel %vm854, %v896, -inf
        %902 = vmax.xlane.f32.xlu0 %v901
        %v903 = vpop.xlane.xlu0 %902
        %v904 = vsub.f32 %v896, %v903
        %v905 = vmul.f32 %v904, 1.442695
        %v906 = vpow.pop %v905
        %v907 = vsel %vm854, %v906, 0.0
        %908 = vadd.xlane.f32.xlu0 %v907
        %v909 = vpop.xlane.xlu0 %908
        %v910 = vrcp.pop %v909
        %v911 = vmul.f32 %v906, %v910
        %v912 = vpack.c.bf16 %v911, %v911
        %913 = vrot.lane.b32.xlu0 %v850, 64
        %v914 = vpop.permute.xlu0 %913
        %v916 = vsel %vm854, %v912, 0
        %vm918 = vcmask 1043456
        %v920 = vsel %vm918, %v914, 0
        %922 = vmatprep.subr.bf16.mxu0 0
        %923 = vmatpush1.bf16.msra.mxu0 %v920
        %924 = vmatprep.subr.bf16.mxu0 0
        %925 = vmatpush1.bf16.msra.mxu0 0
        %926 = vmatprep.subr.bf16.mxu0 0
        %927 = vmatpush1.bf16.msra.mxu0 0
        %928 = vmatprep.subr.bf16.mxu0 0
        %929 = vmatpush1.bf16.msra.mxu0 0
        %930 = vmatprep.subr.bf16.mxu0 0
        %931 = vmatpush1.bf16.msra.mxu0 0
        %932 = vmatprep.subr.bf16.mxu0 0
        %933 = vmatpush1.bf16.msra.mxu0 0
        %934 = vmatprep.subr.bf16.mxu0 0
        %935 = vmatpush1.bf16.msra.mxu0 0
        %936 = vmatprep.subr.bf16.mxu0 0
        %937 = vmatpush1.bf16.msra.mxu0 0
        %938 = vmatprep.subr.bf16.mxu0 0
        %939 = vmatpush1.bf16.msra.mxu0 0
        %940 = vmatprep.subr.bf16.mxu0 0
        %941 = vmatpush1.bf16.msra.mxu0 0
        %942 = vmatprep.subr.bf16.mxu0 0
        %943 = vmatpush1.bf16.msra.mxu0 0
        %944 = vmatprep.subr.bf16.mxu0 0
        %945 = vmatpush1.bf16.msra.mxu0 0
        %946 = vmatprep.subr.bf16.mxu0 0
        %947 = vmatpush1.bf16.msra.mxu0 0
        %948 = vmatprep.subr.bf16.mxu0 0
        %949 = vmatpush1.bf16.msra.mxu0 0
        %950 = vmatprep.subr.bf16.mxu0 0
        %951 = vmatpush1.bf16.msra.mxu0 0
        %952 = vmatprep.subr.bf16.mxu0 0
        %953 = vmatpush1.bf16.msra.mxu0 0
        %954 = vmatprep.mubr.bf16.mxu0 0
        %955 = vmatmul.mubr.bf16.gmra.mrb[0].mxu0 %v916
        %v956 = vpop.f32.mrb[0].mxu0
        %v957 = vadd.f32 0.0, %v956
        %v958 = vpop.f32.mrb[0].mxu0
        %v959 = vpop.f32.mrb[0].mxu0
        %v960 = vpop.f32.mrb[0].mxu0
        %961 = vdwg.mxu0
        %962 = vrot.lane.b32.xlu0 %v850, 120
        %v963 = vpop.permute.xlu0 %962
        %964 = vrot.lane.b32.xlu0 %v850, 88
        %v965 = vpop.permute.xlu0 %964
        %v967 = vsel %vm854, %v963, 0
        %v970 = vsel %vm854, %v965, 0
        %972 = vmatprep.subr.bf16.mxu0 0
        %973 = vmatpush1.bf16.xpose.msra.mxu0 %v970
        %974 = vmatprep.subr.bf16.mxu0 0
        %975 = vmatpush1.bf16.xpose.msra.mxu0 0
        %976 = vmatprep.subr.bf16.mxu0 0
        %977 = vmatpush1.bf16.xpose.msra.mxu0 0
        %978 = vmatprep.subr.bf16.mxu0 0
        %979 = vmatpush1.bf16.xpose.msra.mxu0 0
        %980 = vmatprep.subr.bf16.mxu0 0
        %981 = vmatpush1.bf16.xpose.msra.mxu0 0
        %982 = vmatprep.subr.bf16.mxu0 0
        %983 = vmatpush1.bf16.xpose.msra.mxu0 0
        %984 = vmatprep.subr.bf16.mxu0 0
        %985 = vmatpush1.bf16.xpose.msra.mxu0 0
        %986 = vmatprep.subr.bf16.mxu0 0
        %987 = vmatpush1.bf16.xpose.msra.mxu0 0
        %988 = vmatprep.subr.bf16.mxu0 0
        %989 = vmatpush1.bf16.xpose.msra.mxu0 0
        %990 = vmatprep.subr.bf16.mxu0 0
        %991 = vmatpush1.bf16.xpose.msra.mxu0 0
        %992 = vmatprep.subr.bf16.mxu0 0
        %993 = vmatpush1.bf16.xpose.msra.mxu0 0
        %994 = vmatprep.subr.bf16.mxu0 0
        %995 = vmatpush1.bf16.xpose.msra.mxu0 0
        %996 = vmatprep.subr.bf16.mxu0 0
        %997 = vmatpush1.bf16.xpose.msra.mxu0 0
        %998 = vmatprep.subr.bf16.mxu0 0
        %999 = vmatpush1.bf16.xpose.msra.mxu0 0
        %1000 = vmatprep.subr.bf16.mxu0 0
        %1001 = vmatpush1.bf16.xpose.msra.mxu0 0
        %1002 = vmatprep.subr.bf16.mxu0 0
        %1003 = vmatpush1.bf16.xpose.msra.mxu0 0
        %1004 = vmatprep.mubr.bf16.mxu0 0
        %1005 = vmatmul.mubr.bf16.gmra.mrb[0].mxu0 %v967
        %v1006 = vpop.f32.mrb[0].mxu0
        %v1007 = vadd.f32 0.0, %v1006
        %v1008 = vpop.f32.mrb[0].mxu0
        %v1009 = vpop.f32.mrb[0].mxu0
        %v1010 = vpop.f32.mrb[0].mxu0
        %1011 = vdwg.mxu0
        %v1012 = vsel %vm854, %v1007, -inf
        %1013 = vmax.xlane.f32.xlu0 %v1012
        %v1014 = vpop.xlane.xlu0 %1013
        %v1015 = vsub.f32 %v1007, %v1014
        %v1016 = vmul.f32 %v1015, 1.442695
        %v1017 = vpow.pop %v1016
        %v1018 = vsel %vm854, %v1017, 0.0
        %1019 = vadd.xlane.f32.xlu0 %v1018
        %v1020 = vpop.xlane.xlu0 %1019
        %v1021 = vrcp.pop %v1020
        %v1022 = vmul.f32 %v1017, %v1021
        %v1023 = vpack.c.bf16 %v1022, %v1022
        %1024 = vrot.lane.b32.xlu0 %v850, 56
        %v1025 = vpop.permute.xlu0 %1024
        %v1027 = vsel %vm854, %v1023, 0
        %v1030 = vsel %vm918, %v1025, 0
        %1032 = vmatprep.subr.bf16.mxu0 0
        %1033 = vmatpush1.bf16.msra.mxu0 %v1030
        %1034 = vmatprep.subr.bf16.mxu0 0
        %1035 = vmatpush1.bf16.msra.mxu0 0
        %1036 = vmatprep.subr.bf16.mxu0 0
        %1037 = vmatpush1.bf16.msra.mxu0 0
        %1038 = vmatprep.subr.bf16.mxu0 0
        %1039 = vmatpush1.bf16.msra.mxu0 0
        %1040 = vmatprep.subr.bf16.mxu0 0
        %1041 = vmatpush1.bf16.msra.mxu0 0
        %1042 = vmatprep.subr.bf16.mxu0 0
        %1043 = vmatpush1.bf16.msra.mxu0 0
        %1044 = vmatprep.subr.bf16.mxu0 0
        %1045 = vmatpush1.bf16.msra.mxu0 0
        %1046 = vmatprep.subr.bf16.mxu0 0
        %1047 = vmatpush1.bf16.msra.mxu0 0
        %1048 = vmatprep.subr.bf16.mxu0 0
        %1049 = vmatpush1.bf16.msra.mxu0 0
        %1050 = vmatprep.subr.bf16.mxu0 0
        %1051 = vmatpush1.bf16.msra.mxu0 0
        %1052 = vmatprep.subr.bf16.mxu0 0
        %1053 = vmatpush1.bf16.msra.mxu0 0
        %1054 = vmatprep.subr.bf16.mxu0 0
        %1055 = vmatpush1.bf16.msra.mxu0 0
        %1056 = vmatprep.subr.bf16.mxu0 0
        %1057 = vmatpush1.bf16.msra.mxu0 0
        %1058 = vmatprep.subr.bf16.mxu0 0
        %1059 = vmatpush1.bf16.msra.mxu0 0
        %1060 = vmatprep.subr.bf16.mxu0 0
        %1061 = vmatpush1.bf16.msra.mxu0 0
        %1062 = vmatprep.subr.bf16.mxu0 0
        %1063 = vmatpush1.bf16.msra.mxu0 0
        %1064 = vmatprep.mubr.bf16.mxu0 0
        %1065 = vmatmul.mubr.bf16.gmra.mrb[0].mxu0 %v1027
        %v1066 = vpop.f32.mrb[0].mxu0
        %v1067 = vadd.f32 0.0, %v1066
        %v1068 = vpop.f32.mrb[0].mxu0
        %v1069 = vpop.f32.mrb[0].mxu0
        %v1070 = vpop.f32.mrb[0].mxu0
        %1071 = vdwg.mxu0
        %1072 = vrot.lane.b32.xlu0 %v850, 112
        %v1073 = vpop.permute.xlu0 %1072
        %1074 = vrot.lane.b32.xlu0 %v850, 80
        %v1075 = vpop.permute.xlu0 %1074
        %v1077 = vsel %vm854, %v1073, 0
        %v1080 = vsel %vm854, %v1075, 0
        %1082 = vmatprep.subr.bf16.mxu0 0
        %1083 = vmatpush1.bf16.xpose.msra.mxu0 %v1080
        %1084 = vmatprep.subr.bf16.mxu0 0
        %1085 = vmatpush1.bf16.xpose.msra.mxu0 0
        %1086 = vmatprep.subr.bf16.mxu0 0
        %1087 = vmatpush1.bf16.xpose.msra.mxu0 0
        %1088 = vmatprep.subr.bf16.mxu0 0
        %1089 = vmatpush1.bf16.xpose.msra.mxu0 0
        %1090 = vmatprep.subr.bf16.mxu0 0
        %1091 = vmatpush1.bf16.xpose.msra.mxu0 0
        %1092 = vmatprep.subr.bf16.mxu0 0
        %1093 = vmatpush1.bf16.xpose.msra.mxu0 0
        %1094 = vmatprep.subr.bf16.mxu0 0
        %1095 = vmatpush1.bf16.xpose.msra.mxu0 0
        %1096 = vmatprep.subr.bf16.mxu0 0
        %1097 = vmatpush1.bf16.xpose.msra.mxu0 0
        %1098 = vmatprep.subr.bf16.mxu0 0
        %1099 = vmatpush1.bf16.xpose.msra.mxu0 0
        %1100 = vmatprep.subr.bf16.mxu0 0
        %1101 = vmatpush1.bf16.xpose.msra.mxu0 0
        %1102 = vmatprep.subr.bf16.mxu0 0
        %1103 = vmatpush1.bf16.xpose.msra.mxu0 0
        %1104 = vmatprep.subr.bf16.mxu0 0
        %1105 = vmatpush1.bf16.xpose.msra.mxu0 0
        %1106 = vmatprep.subr.bf16.mxu0 0
        %1107 = vmatpush1.bf16.xpose.msra.mxu0 0
        %1108 = vmatprep.subr.bf16.mxu0 0
        %1109 = vmatpush1.bf16.xpose.msra.mxu0 0
        %1110 = vmatprep.subr.bf16.mxu0 0
        %1111 = vmatpush1.bf16.xpose.msra.mxu0 0
        %1112 = vmatprep.subr.bf16.mxu0 0
        %1113 = vmatpush1.bf16.xpose.msra.mxu0 0
        %1114 = vmatprep.mubr.bf16.mxu0 0
        %1115 = vmatmul.mubr.bf16.gmra.mrb[0].mxu0 %v1077
        %v1116 = vpop.f32.mrb[0].mxu0
        %v1117 = vadd.f32 0.0, %v1116
        %v1118 = vpop.f32.mrb[0].mxu0
        %v1119 = vpop.f32.mrb[0].mxu0
        %v1120 = vpop.f32.mrb[0].mxu0
        %1121 = vdwg.mxu0
        %v1122 = vsel %vm854, %v1117, -inf
        %1123 = vmax.xlane.f32.xlu0 %v1122
        %v1124 = vpop.xlane.xlu0 %1123
        %v1125 = vsub.f32 %v1117, %v1124
        %v1126 = vmul.f32 %v1125, 1.442695
        %v1127 = vpow.pop %v1126
        %v1128 = vsel %vm854, %v1127, 0.0
        %1129 = vadd.xlane.f32.xlu0 %v1128
        %v1130 = vpop.xlane.xlu0 %1129
        %v1131 = vrcp.pop %v1130
        %v1132 = vmul.f32 %v1127, %v1131
        %v1133 = vpack.c.bf16 %v1132, %v1132
        %1134 = vrot.lane.b32.xlu0 %v850, 48
        %v1135 = vpop.permute.xlu0 %1134
        %v1137 = vsel %vm854, %v1133, 0
        %v1140 = vsel %vm918, %v1135, 0
        %1142 = vmatprep.subr.bf16.mxu0 0
        %1143 = vmatpush1.bf16.msra.mxu0 %v1140
        %1144 = vmatprep.subr.bf16.mxu0 0
        %1145 = vmatpush1.bf16.msra.mxu0 0
        %1146 = vmatprep.subr.bf16.mxu0 0
        %1147 = vmatpush1.bf16.msra.mxu0 0
        %1148 = vmatprep.subr.bf16.mxu0 0
        %1149 = vmatpush1.bf16.msra.mxu0 0
        %1150 = vmatprep.subr.bf16.mxu0 0
        %1151 = vmatpush1.bf16.msra.mxu0 0
        %1152 = vmatprep.subr.bf16.mxu0 0
        %1153 = vmatpush1.bf16.msra.mxu0 0
        %1154 = vmatprep.subr.bf16.mxu0 0
        %1155 = vmatpush1.bf16.msra.mxu0 0
        %1156 = vmatprep.subr.bf16.mxu0 0
        %1157 = vmatpush1.bf16.msra.mxu0 0
        %1158 = vmatprep.subr.bf16.mxu0 0
        %1159 = vmatpush1.bf16.msra.mxu0 0
        %1160 = vmatprep.subr.bf16.mxu0 0
        %1161 = vmatpush1.bf16.msra.mxu0 0
        %1162 = vmatprep.subr.bf16.mxu0 0
        %1163 = vmatpush1.bf16.msra.mxu0 0
        %1164 = vmatprep.subr.bf16.mxu0 0
        %1165 = vmatpush1.bf16.msra.mxu0 0
        %1166 = vmatprep.subr.bf16.mxu0 0
        %1167 = vmatpush1.bf16.msra.mxu0 0
        %1168 = vmatprep.subr.bf16.mxu0 0
        %1169 = vmatpush1.bf16.msra.mxu0 0
        %1170 = vmatprep.subr.bf16.mxu0 0
        %1171 = vmatpush1.bf16.msra.mxu0 0
        %1172 = vmatprep.subr.bf16.mxu0 0
        %1173 = vmatpush1.bf16.msra.mxu0 0
        %1174 = vmatprep.mubr.bf16.mxu0 0
        %1175 = vmatmul.mubr.bf16.gmra.mrb[0].mxu0 %v1137
        %v1176 = vpop.f32.mrb[0].mxu0
        %v1177 = vadd.f32 0.0, %v1176
        %v1178 = vpop.f32.mrb[0].mxu0
        %v1179 = vpop.f32.mrb[0].mxu0
        %v1180 = vpop.f32.mrb[0].mxu0
        %1181 = vdwg.mxu0
        %1182 = vrot.lane.b32.xlu0 %v850, 104
        %v1183 = vpop.permute.xlu0 %1182
        %1184 = vrot.lane.b32.xlu0 %v850, 72
        %v1185 = vpop.permute.xlu0 %1184
        %v1187 = vsel %vm854, %v1183, 0
        %v1190 = vsel %vm854, %v1185, 0
        %1192 = vmatprep.subr.bf16.mxu0 0
        %1193 = vmatpush1.bf16.xpose.msra.mxu0 %v1190
        %1194 = vmatprep.subr.bf16.mxu0 0
        %1195 = vmatpush1.bf16.xpose.msra.mxu0 0
        %1196 = vmatprep.subr.bf16.mxu0 0
        %1197 = vmatpush1.bf16.xpose.msra.mxu0 0
        %1198 = vmatprep.subr.bf16.mxu0 0
        %1199 = vmatpush1.bf16.xpose.msra.mxu0 0
        %1200 = vmatprep.subr.bf16.mxu0 0
        %1201 = vmatpush1.bf16.xpose.msra.mxu0 0
        %1202 = vmatprep.subr.bf16.mxu0 0
        %1203 = vmatpush1.bf16.xpose.msra.mxu0 0
        %1204 = vmatprep.subr.bf16.mxu0 0
        %1205 = vmatpush1.bf16.xpose.msra.mxu0 0
        %1206 = vmatprep.subr.bf16.mxu0 0
        %1207 = vmatpush1.bf16.xpose.msra.mxu0 0
        %1208 = vmatprep.subr.bf16.mxu0 0
        %1209 = vmatpush1.bf16.xpose.msra.mxu0 0
        %1210 = vmatprep.subr.bf16.mxu0 0
        %1211 = vmatpush1.bf16.xpose.msra.mxu0 0
        %1212 = vmatprep.subr.bf16.mxu0 0
        %1213 = vmatpush1.bf16.xpose.msra.mxu0 0
        %1214 = vmatprep.subr.bf16.mxu0 0
        %1215 = vmatpush1.bf16.xpose.msra.mxu0 0
        %1216 = vmatprep.subr.bf16.mxu0 0
        %1217 = vmatpush1.bf16.xpose.msra.mxu0 0
        %1218 = vmatprep.subr.bf16.mxu0 0
        %1219 = vmatpush1.bf16.xpose.msra.mxu0 0
        %1220 = vmatprep.subr.bf16.mxu0 0
        %1221 = vmatpush1.bf16.xpose.msra.mxu0 0
        %1222 = vmatprep.subr.bf16.mxu0 0
        %1223 = vmatpush1.bf16.xpose.msra.mxu0 0
        %1224 = vmatprep.mubr.bf16.mxu0 0
        %1225 = vmatmul.mubr.bf16.gmra.mrb[0].mxu0 %v1187
        %v1226 = vpop.f32.mrb[0].mxu0
        %v1227 = vadd.f32 0.0, %v1226
        %v1228 = vpop.f32.mrb[0].mxu0
        %v1229 = vpop.f32.mrb[0].mxu0
        %v1230 = vpop.f32.mrb[0].mxu0
        %1231 = vdwg.mxu0
        %v1232 = vsel %vm854, %v1227, -inf
        %1233 = vmax.xlane.f32.xlu0 %v1232
        %v1234 = vpop.xlane.xlu0 %1233
        %v1235 = vsub.f32 %v1227, %v1234
        %v1236 = vmul.f32 %v1235, 1.442695
        %v1237 = vpow.pop %v1236
        %v1238 = vsel %vm854, %v1237, 0.0
        %1239 = vadd.xlane.f32.xlu0 %v1238
        %v1240 = vpop.xlane.xlu0 %1239
        %v1241 = vrcp.pop %v1240
        %v1242 = vmul.f32 %v1237, %v1241
        %v1243 = vpack.c.bf16 %v1242, %v1242
        %1244 = vrot.lane.b32.xlu0 %v850, 40
        %v1245 = vpop.permute.xlu0 %1244
        %v1247 = vsel %vm854, %v1243, 0
        %v1250 = vsel %vm918, %v1245, 0
        %1252 = vmatprep.subr.bf16.mxu0 0
        %1253 = vmatpush1.bf16.msra.mxu0 %v1250
        %1254 = vmatprep.subr.bf16.mxu0 0
        %1255 = vmatpush1.bf16.msra.mxu0 0
        %1256 = vmatprep.subr.bf16.mxu0 0
        %1257 = vmatpush1.bf16.msra.mxu0 0
        %1258 = vmatprep.subr.bf16.mxu0 0
        %1259 = vmatpush1.bf16.msra.mxu0 0
        %1260 = vmatprep.subr.bf16.mxu0 0
        %1261 = vmatpush1.bf16.msra.mxu0 0
        %1262 = vmatprep.subr.bf16.mxu0 0
        %1263 = vmatpush1.bf16.msra.mxu0 0
        %1264 = vmatprep.subr.bf16.mxu0 0
        %1265 = vmatpush1.bf16.msra.mxu0 0
        %1266 = vmatprep.subr.bf16.mxu0 0
        %1267 = vmatpush1.bf16.msra.mxu0 0
        %1268 = vmatprep.subr.bf16.mxu0 0
        %1269 = vmatpush1.bf16.msra.mxu0 0
        %1270 = vmatprep.subr.bf16.mxu0 0
        %1271 = vmatpush1.bf16.msra.mxu0 0
        %1272 = vmatprep.subr.bf16.mxu0 0
        %1273 = vmatpush1.bf16.msra.mxu0 0
        %1274 = vmatprep.subr.bf16.mxu0 0
        %1275 = vmatpush1.bf16.msra.mxu0 0
        %1276 = vmatprep.subr.bf16.mxu0 0
        %1277 = vmatpush1.bf16.msra.mxu0 0
        %1278 = vmatprep.subr.bf16.mxu0 0
        %1279 = vmatpush1.bf16.msra.mxu0 0
        %1280 = vmatprep.subr.bf16.mxu0 0
        %1281 = vmatpush1.bf16.msra.mxu0 0
        %1282 = vmatprep.subr.bf16.mxu0 0
        %1283 = vmatpush1.bf16.msra.mxu0 0
        %1284 = vmatprep.mubr.bf16.mxu0 0
        %1285 = vmatmul.mubr.bf16.gmra.mrb[0].mxu0 %v1247
        %v1286 = vpop.f32.mrb[0].mxu0
        %v1287 = vadd.f32 0.0, %v1286
        %v1288 = vpop.f32.mrb[0].mxu0
        %v1289 = vpop.f32.mrb[0].mxu0
        %v1290 = vpop.f32.mrb[0].mxu0
        %1291 = vdwg.mxu0
        %1293 = vrot.lane.b32.xlu0 %v1067, 8
        %v1294 = vpop.permute.xlu0 %1293
        %1297 = vrot.lane.b32.xlu0 %v1177, 16
        %v1298 = vpop.permute.xlu0 %1297
        %1301 = vrot.lane.b32.xlu0 %v1287, 24
        %v1302 = vpop.permute.xlu0 %1301
        %v1304 = vsel %vm854, %v957, %v1294
        %vm1305 = vcmask 130048
        %v1306 = vsel %vm1305, %v1304, %v1298
        %vm1307 = vcmask 195584
        %v1308 = vsel %vm1307, %v1306, %v1302
        %v1309 = vld [vmem:[#allocation3] sm:$0xf0]
        %v1311 = vrot.slane %v1309, 4
        %1312 = vrot.lane.b32.xlu0 %v1311, 96
        %v1313 = vpop.permute.xlu0 %1312
        %v1315 = vsel %vm854, %v1311, 0
        %v1318 = vsel %vm854, %v1313, 0
        %1320 = vmatprep.subr.bf16.mxu0 0
        %1321 = vmatpush1.bf16.xpose.msra.mxu0 %v1318
        %1322 = vmatprep.subr.bf16.mxu0 0
        %1323 = vmatpush1.bf16.xpose.msra.mxu0 0
        %1324 = vmatprep.subr.bf16.mxu0 0
        %1325 = vmatpush1.bf16.xpose.msra.mxu0 0
        %1326 = vmatprep.subr.bf16.mxu0 0
        %1327 = vmatpush1.bf16.xpose.msra.mxu0 0
        %1328 = vmatprep.subr.bf16.mxu0 0
        %1329 = vmatpush1.bf16.xpose.msra.mxu0 0
        %1330 = vmatprep.subr.bf16.mxu0 0
        %1331 = vmatpush1.bf16.xpose.msra.mxu0 0
        %1332 = vmatprep.subr.bf16.mxu0 0
        %1333 = vmatpush1.bf16.xpose.msra.mxu0 0
        %1334 = vmatprep.subr.bf16.mxu0 0
        %1335 = vmatpush1.bf16.xpose.msra.mxu0 0
        %1336 = vmatprep.subr.bf16.mxu0 0
        %1337 = vmatpush1.bf16.xpose.msra.mxu0 0
        %1338 = vmatprep.subr.bf16.mxu0 0
        %1339 = vmatpush1.bf16.xpose.msra.mxu0 0
        %1340 = vmatprep.subr.bf16.mxu0 0
        %1341 = vmatpush1.bf16.xpose.msra.mxu0 0
        %1342 = vmatprep.subr.bf16.mxu0 0
        %1343 = vmatpush1.bf16.xpose.msra.mxu0 0
        %1344 = vmatprep.subr.bf16.mxu0 0
        %1345 = vmatpush1.bf16.xpose.msra.mxu0 0
        %1346 = vmatprep.subr.bf16.mxu0 0
        %1347 = vmatpush1.bf16.xpose.msra.mxu0 0
        %1348 = vmatprep.subr.bf16.mxu0 0
        %1349 = vmatpush1.bf16.xpose.msra.mxu0 0
        %1350 = vmatprep.subr.bf16.mxu0 0
        %1351 = vmatpush1.bf16.xpose.msra.mxu0 0
        %1352 = vmatprep.mubr.bf16.mxu0 0
        %1353 = vmatmul.mubr.bf16.gmra.mrb[0].mxu0 %v1315
        %v1354 = vpop.f32.mrb[0].mxu0
        %v1355 = vadd.f32 0.0, %v1354
        %v1356 = vpop.f32.mrb[0].mxu0
        %v1357 = vpop.f32.mrb[0].mxu0
        %v1358 = vpop.f32.mrb[0].mxu0
        %1359 = vdwg.mxu0
        %v1360 = vsel %vm854, %v1355, -inf
        %1361 = vmax.xlane.f32.xlu0 %v1360
        %v1362 = vpop.xlane.xlu0 %1361
        %v1363 = vsub.f32 %v1355, %v1362
        %v1364 = vmul.f32 %v1363, 1.442695
        %v1365 = vpow.pop %v1364
        %v1366 = vsel %vm854, %v1365, 0.0
        %1367 = vadd.xlane.f32.xlu0 %v1366
        %v1368 = vpop.xlane.xlu0 %1367
        %v1369 = vrcp.pop %v1368
        %v1370 = vmul.f32 %v1365, %v1369
        %v1371 = vpack.c.bf16 %v1370, %v1370
        %1372 = vrot.lane.b32.xlu0 %v1311, 64
        %v1373 = vpop.permute.xlu0 %1372
        %v1375 = vsel %vm854, %v1371, 0
        %v1378 = vsel %vm918, %v1373, 0
        %1380 = vmatprep.subr.bf16.mxu0 0
        %1381 = vmatpush1.bf16.msra.mxu0 %v1378
        %1382 = vmatprep.subr.bf16.mxu0 0
        %1383 = vmatpush1.bf16.msra.mxu0 0
        %1384 = vmatprep.subr.bf16.mxu0 0
        %1385 = vmatpush1.bf16.msra.mxu0 0
        %1386 = vmatprep.subr.bf16.mxu0 0
        %1387 = vmatpush1.bf16.msra.mxu0 0
        %1388 = vmatprep.subr.bf16.mxu0 0
        %1389 = vmatpush1.bf16.msra.mxu0 0
        %1390 = vmatprep.subr.bf16.mxu0 0
        %1391 = vmatpush1.bf16.msra.mxu0 0
        %1392 = vmatprep.subr.bf16.mxu0 0
        %1393 = vmatpush1.bf16.msra.mxu0 0
        %1394 = vmatprep.subr.bf16.mxu0 0
        %1395 = vmatpush1.bf16.msra.mxu0 0
        %1396 = vmatprep.subr.bf16.mxu0 0
        %1397 = vmatpush1.bf16.msra.mxu0 0
        %1398 = vmatprep.subr.bf16.mxu0 0
        %1399 = vmatpush1.bf16.msra.mxu0 0
        %1400 = vmatprep.subr.bf16.mxu0 0
        %1401 = vmatpush1.bf16.msra.mxu0 0
        %1402 = vmatprep.subr.bf16.mxu0 0
        %1403 = vmatpush1.bf16.msra.mxu0 0
        %1404 = vmatprep.subr.bf16.mxu0 0
        %1405 = vmatpush1.bf16.msra.mxu0 0
        %1406 = vmatprep.subr.bf16.mxu0 0
        %1407 = vmatpush1.bf16.msra.mxu0 0
        %1408 = vmatprep.subr.bf16.mxu0 0
        %1409 = vmatpush1.bf16.msra.mxu0 0
        %1410 = vmatprep.subr.bf16.mxu0 0
        %1411 = vmatpush1.bf16.msra.mxu0 0
        %1412 = vmatprep.mubr.bf16.mxu0 0
        %1413 = vmatmul.mubr.bf16.gmra.mrb[0].mxu0 %v1375
        %v1414 = vpop.f32.mrb[0].mxu0
        %v1415 = vadd.f32 0.0, %v1414
        %v1416 = vpop.f32.mrb[0].mxu0
        %v1417 = vpop.f32.mrb[0].mxu0
        %v1418 = vpop.f32.mrb[0].mxu0
        %1419 = vdwg.mxu0
        %1420 = vrot.lane.b32.xlu0 %v1311, 120
        %v1421 = vpop.permute.xlu0 %1420
        %1422 = vrot.lane.b32.xlu0 %v1311, 88
        %v1423 = vpop.permute.xlu0 %1422
        %v1425 = vsel %vm854, %v1421, 0
        %v1428 = vsel %vm854, %v1423, 0
        %1430 = vmatprep.subr.bf16.mxu0 0
        %1431 = vmatpush1.bf16.xpose.msra.mxu0 %v1428
        %1432 = vmatprep.subr.bf16.mxu0 0
        %1433 = vmatpush1.bf16.xpose.msra.mxu0 0
        %1434 = vmatprep.subr.bf16.mxu0 0
        %1435 = vmatpush1.bf16.xpose.msra.mxu0 0
        %1436 = vmatprep.subr.bf16.mxu0 0
        %1437 = vmatpush1.bf16.xpose.msra.mxu0 0
        %1438 = vmatprep.subr.bf16.mxu0 0
        %1439 = vmatpush1.bf16.xpose.msra.mxu0 0
        %1440 = vmatprep.subr.bf16.mxu0 0
        %1441 = vmatpush1.bf16.xpose.msra.mxu0 0
        %1442 = vmatprep.subr.bf16.mxu0 0
        %1443 = vmatpush1.bf16.xpose.msra.mxu0 0
        %1444 = vmatprep.subr.bf16.mxu0 0
        %1445 = vmatpush1.bf16.xpose.msra.mxu0 0
        %1446 = vmatprep.subr.bf16.mxu0 0
        %1447 = vmatpush1.bf16.xpose.msra.mxu0 0
        %1448 = vmatprep.subr.bf16.mxu0 0
        %1449 = vmatpush1.bf16.xpose.msra.mxu0 0
        %1450 = vmatprep.subr.bf16.mxu0 0
        %1451 = vmatpush1.bf16.xpose.msra.mxu0 0
        %1452 = vmatprep.subr.bf16.mxu0 0
        %1453 = vmatpush1.bf16.xpose.msra.mxu0 0
        %1454 = vmatprep.subr.bf16.mxu0 0
        %1455 = vmatpush1.bf16.xpose.msra.mxu0 0
        %1456 = vmatprep.subr.bf16.mxu0 0
        %1457 = vmatpush1.bf16.xpose.msra.mxu0 0
        %1458 = vmatprep.subr.bf16.mxu0 0
        %1459 = vmatpush1.bf16.xpose.msra.mxu0 0
        %1460 = vmatprep.subr.bf16.mxu0 0
        %1461 = vmatpush1.bf16.xpose.msra.mxu0 0
        %1462 = vmatprep.mubr.bf16.mxu0 0
        %1463 = vmatmul.mubr.bf16.gmra.mrb[0].mxu0 %v1425
        %v1464 = vpop.f32.mrb[0].mxu0
        %v1465 = vadd.f32 0.0, %v1464
        %v1466 = vpop.f32.mrb[0].mxu0
        %v1467 = vpop.f32.mrb[0].mxu0
        %v1468 = vpop.f32.mrb[0].mxu0
        %1469 = vdwg.mxu0
        %v1470 = vsel %vm854, %v1465, -inf
        %1471 = vmax.xlane.f32.xlu0 %v1470
        %v1472 = vpop.xlane.xlu0 %1471
        %v1473 = vsub.f32 %v1465, %v1472
        %v1474 = vmul.f32 %v1473, 1.442695
        %v1475 = vpow.pop %v1474
        %v1476 = vsel %vm854, %v1475, 0.0
        %1477 = vadd.xlane.f32.xlu0 %v1476
        %v1478 = vpop.xlane.xlu0 %1477
        %v1479 = vrcp.pop %v1478
        %v1480 = vmul.f32 %v1475, %v1479
        %v1481 = vpack.c.bf16 %v1480, %v1480
        %1482 = vrot.lane.b32.xlu0 %v1311, 56
        %v1483 = vpop.permute.xlu0 %1482
        %v1485 = vsel %vm854, %v1481, 0
        %v1488 = vsel %vm918, %v1483, 0
        %1490 = vmatprep.subr.bf16.mxu0 0
        %1491 = vmatpush1.bf16.msra.mxu0 %v1488
        %1492 = vmatprep.subr.bf16.mxu0 0
        %1493 = vmatpush1.bf16.msra.mxu0 0
        %1494 = vmatprep.subr.bf16.mxu0 0
        %1495 = vmatpush1.bf16.msra.mxu0 0
        %1496 = vmatprep.subr.bf16.mxu0 0
        %1497 = vmatpush1.bf16.msra.mxu0 0
        %1498 = vmatprep.subr.bf16.mxu0 0
        %1499 = vmatpush1.bf16.msra.mxu0 0
        %1500 = vmatprep.subr.bf16.mxu0 0
        %1501 = vmatpush1.bf16.msra.mxu0 0
        %1502 = vmatprep.subr.bf16.mxu0 0
        %1503 = vmatpush1.bf16.msra.mxu0 0
        %1504 = vmatprep.subr.bf16.mxu0 0
        %1505 = vmatpush1.bf16.msra.mxu0 0
        %1506 = vmatprep.subr.bf16.mxu0 0
        %1507 = vmatpush1.bf16.msra.mxu0 0
        %1508 = vmatprep.subr.bf16.mxu0 0
        %1509 = vmatpush1.bf16.msra.mxu0 0
        %1510 = vmatprep.subr.bf16.mxu0 0
        %1511 = vmatpush1.bf16.msra.mxu0 0
        %1512 = vmatprep.subr.bf16.mxu0 0
        %1513 = vmatpush1.bf16.msra.mxu0 0
        %1514 = vmatprep.subr.bf16.mxu0 0
        %1515 = vmatpush1.bf16.msra.mxu0 0
        %1516 = vmatprep.subr.bf16.mxu0 0
        %1517 = vmatpush1.bf16.msra.mxu0 0
        %1518 = vmatprep.subr.bf16.mxu0 0
        %1519 = vmatpush1.bf16.msra.mxu0 0
        %1520 = vmatprep.subr.bf16.mxu0 0
        %1521 = vmatpush1.bf16.msra.mxu0 0
        %1522 = vmatprep.mubr.bf16.mxu0 0
        %1523 = vmatmul.mubr.bf16.gmra.mrb[0].mxu0 %v1485
        %v1524 = vpop.f32.mrb[0].mxu0
        %v1525 = vadd.f32 0.0, %v1524
        %v1526 = vpop.f32.mrb[0].mxu0
        %v1527 = vpop.f32.mrb[0].mxu0
        %v1528 = vpop.f32.mrb[0].mxu0
        %1529 = vdwg.mxu0
        %1530 = vrot.lane.b32.xlu0 %v1311, 112
        %v1531 = vpop.permute.xlu0 %1530
        %1532 = vrot.lane.b32.xlu0 %v1311, 80
        %v1533 = vpop.permute.xlu0 %1532
        %v1535 = vsel %vm854, %v1531, 0
        %v1538 = vsel %vm854, %v1533, 0
        %1540 = vmatprep.subr.bf16.mxu0 0
        %1541 = vmatpush1.bf16.xpose.msra.mxu0 %v1538
        %1542 = vmatprep.subr.bf16.mxu0 0
        %1543 = vmatpush1.bf16.xpose.msra.mxu0 0
        %1544 = vmatprep.subr.bf16.mxu0 0
        %1545 = vmatpush1.bf16.xpose.msra.mxu0 0
        %1546 = vmatprep.subr.bf16.mxu0 0
        %1547 = vmatpush1.bf16.xpose.msra.mxu0 0
        %1548 = vmatprep.subr.bf16.mxu0 0
        %1549 = vmatpush1.bf16.xpose.msra.mxu0 0
        %1550 = vmatprep.subr.bf16.mxu0 0
        %1551 = vmatpush1.bf16.xpose.msra.mxu0 0
        %1552 = vmatprep.subr.bf16.mxu0 0
        %1553 = vmatpush1.bf16.xpose.msra.mxu0 0
        %1554 = vmatprep.subr.bf16.mxu0 0
        %1555 = vmatpush1.bf16.xpose.msra.mxu0 0
        %1556 = vmatprep.subr.bf16.mxu0 0
        %1557 = vmatpush1.bf16.xpose.msra.mxu0 0
        %1558 = vmatprep.subr.bf16.mxu0 0
        %1559 = vmatpush1.bf16.xpose.msra.mxu0 0
        %1560 = vmatprep.subr.bf16.mxu0 0
        %1561 = vmatpush1.bf16.xpose.msra.mxu0 0
        %1562 = vmatprep.subr.bf16.mxu0 0
        %1563 = vmatpush1.bf16.xpose.msra.mxu0 0
        %1564 = vmatprep.subr.bf16.mxu0 0
        %1565 = vmatpush1.bf16.xpose.msra.mxu0 0
        %1566 = vmatprep.subr.bf16.mxu0 0
        %1567 = vmatpush1.bf16.xpose.msra.mxu0 0
        %1568 = vmatprep.subr.bf16.mxu0 0
        %1569 = vmatpush1.bf16.xpose.msra.mxu0 0
        %1570 = vmatprep.subr.bf16.mxu0 0
        %1571 = vmatpush1.bf16.xpose.msra.mxu0 0
        %1572 = vmatprep.mubr.bf16.mxu0 0
        %1573 = vmatmul.mubr.bf16.gmra.mrb[0].mxu0 %v1535
        %v1574 = vpop.f32.mrb[0].mxu0
        %v1575 = vadd.f32 0.0, %v1574
        %v1576 = vpop.f32.mrb[0].mxu0
        %v1577 = vpop.f32.mrb[0].mxu0
        %v1578 = vpop.f32.mrb[0].mxu0
        %1579 = vdwg.mxu0
        %v1580 = vsel %vm854, %v1575, -inf
        %1581 = vmax.xlane.f32.xlu0 %v1580
        %v1582 = vpop.xlane.xlu0 %1581
        %v1583 = vsub.f32 %v1575, %v1582
        %v1584 = vmul.f32 %v1583, 1.442695
        %v1585 = vpow.pop %v1584
        %v1586 = vsel %vm854, %v1585, 0.0
        %1587 = vadd.xlane.f32.xlu0 %v1586
        %v1588 = vpop.xlane.xlu0 %1587
        %v1589 = vrcp.pop %v1588
        %v1590 = vmul.f32 %v1585, %v1589
        %v1591 = vpack.c.bf16 %v1590, %v1590
        %1592 = vrot.lane.b32.xlu0 %v1311, 48
        %v1593 = vpop.permute.xlu0 %1592
        %v1595 = vsel %vm854, %v1591, 0
        %v1598 = vsel %vm918, %v1593, 0
        %1600 = vmatprep.subr.bf16.mxu0 0
        %1601 = vmatpush1.bf16.msra.mxu0 %v1598
        %1602 = vmatprep.subr.bf16.mxu0 0
        %1603 = vmatpush1.bf16.msra.mxu0 0
        %1604 = vmatprep.subr.bf16.mxu0 0
        %1605 = vmatpush1.bf16.msra.mxu0 0
        %1606 = vmatprep.subr.bf16.mxu0 0
        %1607 = vmatpush1.bf16.msra.mxu0 0
        %1608 = vmatprep.subr.bf16.mxu0 0
        %1609 = vmatpush1.bf16.msra.mxu0 0
        %1610 = vmatprep.subr.bf16.mxu0 0
        %1611 = vmatpush1.bf16.msra.mxu0 0
        %1612 = vmatprep.subr.bf16.mxu0 0
        %1613 = vmatpush1.bf16.msra.mxu0 0
        %1614 = vmatprep.subr.bf16.mxu0 0
        %1615 = vmatpush1.bf16.msra.mxu0 0
        %1616 = vmatprep.subr.bf16.mxu0 0
        %1617 = vmatpush1.bf16.msra.mxu0 0
        %1618 = vmatprep.subr.bf16.mxu0 0
        %1619 = vmatpush1.bf16.msra.mxu0 0
        %1620 = vmatprep.subr.bf16.mxu0 0
        %1621 = vmatpush1.bf16.msra.mxu0 0
        %1622 = vmatprep.subr.bf16.mxu0 0
        %1623 = vmatpush1.bf16.msra.mxu0 0
        %1624 = vmatprep.subr.bf16.mxu0 0
        %1625 = vmatpush1.bf16.msra.mxu0 0
        %1626 = vmatprep.subr.bf16.mxu0 0
        %1627 = vmatpush1.bf16.msra.mxu0 0
        %1628 = vmatprep.subr.bf16.mxu0 0
        %1629 = vmatpush1.bf16.msra.mxu0 0
        %1630 = vmatprep.subr.bf16.mxu0 0
        %1631 = vmatpush1.bf16.msra.mxu0 0
        %1632 = vmatprep.mubr.bf16.mxu0 0
        %1633 = vmatmul.mubr.bf16.gmra.mrb[0].mxu0 %v1595
        %v1634 = vpop.f32.mrb[0].mxu0
        %v1635 = vadd.f32 0.0, %v1634
        %v1636 = vpop.f32.mrb[0].mxu0
        %v1637 = vpop.f32.mrb[0].mxu0
        %v1638 = vpop.f32.mrb[0].mxu0
        %1639 = vdwg.mxu0
        %1640 = vrot.lane.b32.xlu0 %v1311, 104
        %v1641 = vpop.permute.xlu0 %1640
        %1642 = vrot.lane.b32.xlu0 %v1311, 72
        %v1643 = vpop.permute.xlu0 %1642
        %v1645 = vsel %vm854, %v1641, 0
        %v1648 = vsel %vm854, %v1643, 0
        %1650 = vmatprep.subr.bf16.mxu0 0
        %1651 = vmatpush1.bf16.xpose.msra.mxu0 %v1648
        %1652 = vmatprep.subr.bf16.mxu0 0
        %1653 = vmatpush1.bf16.xpose.msra.mxu0 0
        %1654 = vmatprep.subr.bf16.mxu0 0
        %1655 = vmatpush1.bf16.xpose.msra.mxu0 0
        %1656 = vmatprep.subr.bf16.mxu0 0
        %1657 = vmatpush1.bf16.xpose.msra.mxu0 0
        %1658 = vmatprep.subr.bf16.mxu0 0
        %1659 = vmatpush1.bf16.xpose.msra.mxu0 0
        %1660 = vmatprep.subr.bf16.mxu0 0
        %1661 = vmatpush1.bf16.xpose.msra.mxu0 0
        %1662 = vmatprep.subr.bf16.mxu0 0
        %1663 = vmatpush1.bf16.xpose.msra.mxu0 0
        %1664 = vmatprep.subr.bf16.mxu0 0
        %1665 = vmatpush1.bf16.xpose.msra.mxu0 0
        %1666 = vmatprep.subr.bf16.mxu0 0
        %1667 = vmatpush1.bf16.xpose.msra.mxu0 0
        %1668 = vmatprep.subr.bf16.mxu0 0
        %1669 = vmatpush1.bf16.xpose.msra.mxu0 0
        %1670 = vmatprep.subr.bf16.mxu0 0
        %1671 = vmatpush1.bf16.xpose.msra.mxu0 0
        %1672 = vmatprep.subr.bf16.mxu0 0
        %1673 = vmatpush1.bf16.xpose.msra.mxu0 0
        %1674 = vmatprep.subr.bf16.mxu0 0
        %1675 = vmatpush1.bf16.xpose.msra.mxu0 0
        %1676 = vmatprep.subr.bf16.mxu0 0
        %1677 = vmatpush1.bf16.xpose.msra.mxu0 0
        %1678 = vmatprep.subr.bf16.mxu0 0
        %1679 = vmatpush1.bf16.xpose.msra.mxu0 0
        %1680 = vmatprep.subr.bf16.mxu0 0
        %1681 = vmatpush1.bf16.xpose.msra.mxu0 0
        %1682 = vmatprep.mubr.bf16.mxu0 0
        %1683 = vmatmul.mubr.bf16.gmra.mrb[0].mxu0 %v1645
        %v1684 = vpop.f32.mrb[0].mxu0
        %v1685 = vadd.f32 0.0, %v1684
        %v1686 = vpop.f32.mrb[0].mxu0
        %v1687 = vpop.f32.mrb[0].mxu0
        %v1688 = vpop.f32.mrb[0].mxu0
        %1689 = vdwg.mxu0
        %v1690 = vsel %vm854, %v1685, -inf
        %1691 = vmax.xlane.f32.xlu0 %v1690
        %v1692 = vpop.xlane.xlu0 %1691
        %v1693 = vsub.f32 %v1685, %v1692
        %v1694 = vmul.f32 %v1693, 1.442695
        %v1695 = vpow.pop %v1694
        %v1696 = vsel %vm854, %v1695, 0.0
        %1697 = vadd.xlane.f32.xlu0 %v1696
        %v1698 = vpop.xlane.xlu0 %1697
        %v1699 = vrcp.pop %v1698
        %v1700 = vmul.f32 %v1695, %v1699
        %v1701 = vpack.c.bf16 %v1700, %v1700
        %1702 = vrot.lane.b32.xlu0 %v1311, 40
        %v1703 = vpop.permute.xlu0 %1702
        %v1705 = vsel %vm854, %v1701, 0
        %v1708 = vsel %vm918, %v1703, 0
        %1710 = vmatprep.subr.bf16.mxu0 0
        %1711 = vmatpush1.bf16.msra.mxu0 %v1708
        %1712 = vmatprep.subr.bf16.mxu0 0
        %1713 = vmatpush1.bf16.msra.mxu0 0
        %1714 = vmatprep.subr.bf16.mxu0 0
        %1715 = vmatpush1.bf16.msra.mxu0 0
        %1716 = vmatprep.subr.bf16.mxu0 0
        %1717 = vmatpush1.bf16.msra.mxu0 0
        %1718 = vmatprep.subr.bf16.mxu0 0
        %1719 = vmatpush1.bf16.msra.mxu0 0
        %1720 = vmatprep.subr.bf16.mxu0 0
        %1721 = vmatpush1.bf16.msra.mxu0 0
        %1722 = vmatprep.subr.bf16.mxu0 0
        %1723 = vmatpush1.bf16.msra.mxu0 0
        %1724 = vmatprep.subr.bf16.mxu0 0
        %1725 = vmatpush1.bf16.msra.mxu0 0
        %1726 = vmatprep.subr.bf16.mxu0 0
        %1727 = vmatpush1.bf16.msra.mxu0 0
        %1728 = vmatprep.subr.bf16.mxu0 0
        %1729 = vmatpush1.bf16.msra.mxu0 0
        %1730 = vmatprep.subr.bf16.mxu0 0
        %1731 = vmatpush1.bf16.msra.mxu0 0
        %1732 = vmatprep.subr.bf16.mxu0 0
        %1733 = vmatpush1.bf16.msra.mxu0 0
        %1734 = vmatprep.subr.bf16.mxu0 0
        %1735 = vmatpush1.bf16.msra.mxu0 0
        %1736 = vmatprep.subr.bf16.mxu0 0
        %1737 = vmatpush1.bf16.msra.mxu0 0
        %1738 = vmatprep.subr.bf16.mxu0 0
        %1739 = vmatpush1.bf16.msra.mxu0 0
        %1740 = vmatprep.subr.bf16.mxu0 0
        %1741 = vmatpush1.bf16.msra.mxu0 0
        %1742 = vmatprep.mubr.bf16.mxu0 0
        %1743 = vmatmul.mubr.bf16.gmra.mrb[0].mxu0 %v1705
        %v1744 = vpop.f32.mrb[0].mxu0
        %v1745 = vadd.f32 0.0, %v1744
        %v1746 = vpop.f32.mrb[0].mxu0
        %v1747 = vpop.f32.mrb[0].mxu0
        %v1748 = vpop.f32.mrb[0].mxu0
        %1749 = vdwg.mxu0
        %1751 = vrot.lane.b32.xlu0 %v1525, 8
        %v1752 = vpop.permute.xlu0 %1751
        %1755 = vrot.lane.b32.xlu0 %v1635, 16
        %v1756 = vpop.permute.xlu0 %1755
        %1759 = vrot.lane.b32.xlu0 %v1745, 24
        %v1760 = vpop.permute.xlu0 %1759
        %v1762 = vsel %vm854, %v1415, %v1752
        %v1763 = vsel %vm1305, %v1762, %v1756
        %v1764 = vsel %vm1307, %v1763, %v1760
        %v1765 = vpack.c.bf16 %v1764, %v1308
        %v1766 = vld [vmem:[%s713] sm:$0xf]
        %v1767 = vld [vmem:[%s713 + $0x4] sm:$0xf]
        %v1768 = vld [vmem:[%s713 + $0x8] sm:$0xf]
        %v1769 = vld [vmem:[%s713 + $0xc] sm:$0xf]
        %v1770 = vld [vmem:[%s593] sm:$0x1]
        %v1772 = vlaneseq
        %v1773 = vshrl.u32 %v1772, 7
        %v1774 = vsub.s32 0, %v1773
        %v1775 = vrot.slane %v1770, %v1774
        %v1781 = vunpack.c.l.b16 %v1766
        %v1782 = vunpack.c.l.b16 %v1767
        %v1783 = vunpack.c.l.b16 %v1768
        %v1784 = vunpack.c.l.b16 %v1769
        %v1785 = vpack.c.b16 %v1782, %v1781
        %v1786 = vpack.c.b16 %v1784, %v1783
        %v1790 = vsel %vm742, %v1765, 0
        %1792 = vmatprep.subr.bf16.mxu0 0
        %1793 = vmatpush1.bf16.msra.mxu0 %v1785
        %1794 = vmatprep.subr.bf16.mxu0 0
        %1795 = vmatpush1.bf16.msra.mxu0 %v1786
        %1796 = vmatprep.subr.bf16.mxu0 0
        %1797 = vmatpush1.bf16.msra.mxu0 0
        %1798 = vmatprep.subr.bf16.mxu0 0
        %1799 = vmatpush1.bf16.msra.mxu0 0
        %1800 = vmatprep.subr.bf16.mxu0 0
        %1801 = vmatpush1.bf16.msra.mxu0 0
        %1802 = vmatprep.subr.bf16.mxu0 0
        %1803 = vmatpush1.bf16.msra.mxu0 0
        %1804 = vmatprep.subr.bf16.mxu0 0
        %1805 = vmatpush1.bf16.msra.mxu0 0
        %1806 = vmatprep.subr.bf16.mxu0 0
        %1807 = vmatpush1.bf16.msra.mxu0 0
        %1808 = vmatprep.subr.bf16.mxu0 0
        %1809 = vmatpush1.bf16.msra.mxu0 0
        %1810 = vmatprep.subr.bf16.mxu0 0
        %1811 = vmatpush1.bf16.msra.mxu0 0
        %1812 = vmatprep.subr.bf16.mxu0 0
        %1813 = vmatpush1.bf16.msra.mxu0 0
        %1814 = vmatprep.subr.bf16.mxu0 0
        %1815 = vmatpush1.bf16.msra.mxu0 0
        %1816 = vmatprep.subr.bf16.mxu0 0
        %1817 = vmatpush1.bf16.msra.mxu0 0
        %1818 = vmatprep.subr.bf16.mxu0 0
        %1819 = vmatpush1.bf16.msra.mxu0 0
        %1820 = vmatprep.subr.bf16.mxu0 0
        %1821 = vmatpush1.bf16.msra.mxu0 0
        %1822 = vmatprep.subr.bf16.mxu0 0
        %1823 = vmatpush1.bf16.msra.mxu0 0
        %1824 = vmatprep.mubr.bf16.mxu0 0
        %1825 = vmatmul.mubr.bf16.gmra.mrb[0].mxu0 %v1790
        %v1826 = vpop.f32.mrb[0].mxu0
        %v1827 = vadd.f32 %v1775, %v1826
        %v1828 = vpop.f32.mrb[0].mxu0
        %v1829 = vpop.f32.mrb[0].mxu0
        %v1830 = vadd.f32 %v1775, %v1829
        %v1831 = vpop.f32.mrb[0].mxu0
        %1832 = vdwg.mxu0
        %v1833 = vadd.f32 %v738, %v1827
        %v1834 = vadd.f32 %v739, %v1830
        %v1835 = vld [vmem:[%s601] sm:$0x1]
        %v1836 = vld [vmem:[%s609] sm:$0x1]
        %v1837 = vsel %vm742, %v1833, 0.0
        %1838 = vadd.xlane.f32.xlu0 %v1837
        %v1839 = vpop.xlane.xlu0 %1838
        %v1840 = vsel %vm742, %v1834, 0.0
        %1841 = vadd.xlane.f32.xlu0 %v1840
        %v1842 = vpop.xlane.xlu0 %1841
        %v1843 = vmul.f32 %v1839, %v749
        %v1844 = vmul.f32 %v1842, %v749
        %v1845 = vsub.f32 %v1833, %v1843
        %v1846 = vsub.f32 %v1834, %v1844
        %v1847 = vmul.f32 %v1845, %v1845
        %v1848 = vmul.f32 %v1846, %v1846
        %v1849 = vsel %vm742, %v1847, 0.0
        %1850 = vadd.xlane.f32.xlu0 %v1849
        %v1851 = vpop.xlane.xlu0 %1850
        %v1852 = vsel %vm742, %v1848, 0.0
        %1853 = vadd.xlane.f32.xlu0 %v1852
        %v1854 = vpop.xlane.xlu0 %1853
        %v1855 = vmul.f32 %v1851, %v749
        %v1856 = vmul.f32 %v1854, %v749
        %v1857 = vadd.f32 %v1855, 1e-05
        %v1858 = vadd.f32 %v1856, 1e-05
        %v1859 = vrsqrt.pop %v1857
        %v1860 = vrsqrt.pop %v1858
        %v1861 = vmul.f32 %v1845, %v1859
        %v1862 = vmul.f32 %v1846, %v1860
        %v1864 = vlaneseq
        %v1865 = vshrl.u32 %v1864, 7
        %v1866 = vsub.s32 0, %v1865
        %v1867 = vrot.slane %v1835, %v1866
        %v1869 = vmul.f32 %v1861, %v1867
        %v1870 = vmul.f32 %v1862, %v1867
        %v1872 = vlaneseq
        %v1873 = vshrl.u32 %v1872, 7
        %v1874 = vsub.s32 0, %v1873
        %v1875 = vrot.slane %v1836, %v1874
        %v1877 = vadd.f32 %v1869, %v1875
        %v1878 = vadd.f32 %v1870, %v1875
        %v1879 = vpack.c.bf16 %v1878, %v1877
        %v1880 = vld [vmem:[%s718] sm:$0xf]
        %v1881 = vld [vmem:[%s718 + $0x4] sm:$0xf]
        %v1882 = vld [vmem:[%s718 + $0x8] sm:$0xf]
        %v1883 = vld [vmem:[%s718 + $0xc] sm:$0xf]
        %v1884 = vld [vmem:[%s617] sm:$0x1]
        %v1886 = vlaneseq
        %v1887 = vshrl.u32 %v1886, 7
        %v1888 = vsub.s32 0, %v1887
        %v1889 = vrot.slane %v1884, %v1888
        %v1895 = vunpack.c.l.b16 %v1880
        %v1896 = vunpack.c.l.b16 %v1881
        %v1897 = vunpack.c.l.b16 %v1882
        %v1898 = vunpack.c.l.b16 %v1883
        %v1899 = vpack.c.b16 %v1896, %v1895
        %v1900 = vpack.c.b16 %v1898, %v1897
        %v1904 = vsel %vm742, %v1879, 0
        %1906 = vmatprep.subr.bf16.mxu0 0
        %1907 = vmatpush1.bf16.msra.mxu0 %v1899
        %1908 = vmatprep.subr.bf16.mxu0 0
        %1909 = vmatpush1.bf16.msra.mxu0 %v1900
        %1910 = vmatprep.subr.bf16.mxu0 0
        %1911 = vmatpush1.bf16.msra.mxu0 0
        %1912 = vmatprep.subr.bf16.mxu0 0
        %1913 = vmatpush1.bf16.msra.mxu0 0
        %1914 = vmatprep.subr.bf16.mxu0 0
        %1915 = vmatpush1.bf16.msra.mxu0 0
        %1916 = vmatprep.subr.bf16.mxu0 0
        %1917 = vmatpush1.bf16.msra.mxu0 0
        %1918 = vmatprep.subr.bf16.mxu0 0
        %1919 = vmatpush1.bf16.msra.mxu0 0
        %1920 = vmatprep.subr.bf16.mxu0 0
        %1921 = vmatpush1.bf16.msra.mxu0 0
        %1922 = vmatprep.subr.bf16.mxu0 0
        %1923 = vmatpush1.bf16.msra.mxu0 0
        %1924 = vmatprep.subr.bf16.mxu0 0
        %1925 = vmatpush1.bf16.msra.mxu0 0
        %1926 = vmatprep.subr.bf16.mxu0 0
        %1927 = vmatpush1.bf16.msra.mxu0 0
        %1928 = vmatprep.subr.bf16.mxu0 0
        %1929 = vmatpush1.bf16.msra.mxu0 0
        %1930 = vmatprep.subr.bf16.mxu0 0
        %1931 = vmatpush1.bf16.msra.mxu0 0
        %1932 = vmatprep.subr.bf16.mxu0 0
        %1933 = vmatpush1.bf16.msra.mxu0 0
        %1934 = vmatprep.subr.bf16.mxu0 0
        %1935 = vmatpush1.bf16.msra.mxu0 0
        %1936 = vmatprep.subr.bf16.mxu0 0
        %1937 = vmatpush1.bf16.msra.mxu0 0
        %1938 = vmatprep.mubr.bf16.mxu0 0
        %1939 = vmatmul.mubr.bf16.gmra.mrb[0].mxu0 %v1904
        %v1940 = vpop.f32.mrb[0].mxu0
        %v1941 = vadd.f32 %v1889, %v1940
        %v1942 = vpop.f32.mrb[0].mxu0
        %v1943 = vpop.f32.mrb[0].mxu0
        %v1944 = vadd.f32 %v1889, %v1943
        %v1945 = vpop.f32.mrb[0].mxu0
        %1946 = vdwg.mxu0
        %v1947 = vmul.f32 %v1941, %v1941
        %v1948 = vmul.f32 %v1944, %v1944
        %v1949 = vmul.f32 %v1941, %v1947
        %v1950 = vmul.f32 %v1944, %v1948
        %v1951 = vmul.f32 %v1949, 0.044715
        %v1952 = vmul.f32 %v1950, 0.044715
        %v1953 = vadd.f32 %v1941, %v1951
        %v1954 = vadd.f32 %v1944, %v1952
        %v1955 = vmul.f32 %v1953, 0.7978846
        %v1956 = vmul.f32 %v1954, 0.7978846
        %v1957 = vtanh.pop %v1955
        %v1958 = vtanh.pop %v1956
        %v1959 = vadd.f32 %v1957, 1.0
        %v1960 = vadd.f32 %v1958, 1.0
        %v1961 = vmul.f32 %v1959, 0.5
        %v1962 = vmul.f32 %v1960, 0.5
        %v1963 = vmul.f32 %v1941, %v1961
        %v1964 = vmul.f32 %v1944, %v1962
        %v1965 = vpack.c.bf16 %v1964, %v1963
        %v1966 = vld [vmem:[%s723] sm:$0xf]
        %v1967 = vld [vmem:[%s723 + $0x4] sm:$0xf]
        %v1968 = vld [vmem:[%s723 + $0x8] sm:$0xf]
        %v1969 = vld [vmem:[%s723 + $0xc] sm:$0xf]
        %v1970 = vld [vmem:[%s723 + $0x10] sm:$0xf]
        %v1971 = vld [vmem:[%s723 + $0x14] sm:$0xf]
        %v1972 = vld [vmem:[%s723 + $0x18] sm:$0xf]
        %v1973 = vld [vmem:[%s723 + $0x1c] sm:$0xf]
        %v1974 = vld [vmem:[%s726] sm:$0x1]
        %v1976 = vlaneseq
        %v1977 = vshrl.u32 %v1976, 7
        %v1978 = vsub.s32 0, %v1977
        %v1979 = vrot.slane %v1974, %v1978
        %v1989 = vunpack.c.l.b16 %v1966
        %v1990 = vunpack.c.l.b16 %v1967
        %v1991 = vunpack.c.l.b16 %v1968
        %v1992 = vunpack.c.l.b16 %v1969
        %v1993 = vunpack.c.l.b16 %v1970
        %v1994 = vunpack.c.l.b16 %v1971
        %v1995 = vunpack.c.l.b16 %v1972
        %v1996 = vunpack.c.l.b16 %v1973
        %v1997 = vpack.c.b16 %v1990, %v1989
        %v1998 = vpack.c.b16 %v1992, %v1991
        %v1999 = vpack.c.b16 %v1994, %v1993
        %v2000 = vpack.c.b16 %v1996, %v1995
        %vm2005 = vcmask 523264
        %v2007 = vsel %vm2005, %v1965, 0
        %2009 = vmatprep.subr.bf16.mxu0 0
        %2010 = vmatpush1.bf16.msra.mxu0 %v1997
        %2011 = vmatprep.subr.bf16.mxu0 0
        %2012 = vmatpush1.bf16.msra.mxu0 %v1998
        %2013 = vmatprep.subr.bf16.mxu0 0
        %2014 = vmatpush1.bf16.msra.mxu0 %v1999
        %2015 = vmatprep.subr.bf16.mxu0 0
        %2016 = vmatpush1.bf16.msra.mxu0 %v2000
        %2017 = vmatprep.subr.bf16.mxu0 0
        %2018 = vmatpush1.bf16.msra.mxu0 0
        %2019 = vmatprep.subr.bf16.mxu0 0
        %2020 = vmatpush1.bf16.msra.mxu0 0
        %2021 = vmatprep.subr.bf16.mxu0 0
        %2022 = vmatpush1.bf16.msra.mxu0 0
        %2023 = vmatprep.subr.bf16.mxu0 0
        %2024 = vmatpush1.bf16.msra.mxu0 0
        %2025 = vmatprep.subr.bf16.mxu0 0
        %2026 = vmatpush1.bf16.msra.mxu0 0
        %2027 = vmatprep.subr.bf16.mxu0 0
        %2028 = vmatpush1.bf16.msra.mxu0 0
        %2029 = vmatprep.subr.bf16.mxu0 0
        %2030 = vmatpush1.bf16.msra.mxu0 0
        %2031 = vmatprep.subr.bf16.mxu0 0
        %2032 = vmatpush1.bf16.msra.mxu0 0
        %2033 = vmatprep.subr.bf16.mxu0 0
        %2034 = vmatpush1.bf16.msra.mxu0 0
        %2035 = vmatprep.subr.bf16.mxu0 0
        %2036 = vmatpush1.bf16.msra.mxu0 0
        %2037 = vmatprep.subr.bf16.mxu0 0
        %2038 = vmatpush1.bf16.msra.mxu0 0
        %2039 = vmatprep.subr.bf16.mxu0 0
        %2040 = vmatpush1.bf16.msra.mxu0 0
        %2041 = vmatprep.mubr.bf16.mxu0 0
        %2042 = vmatmul.mubr.bf16.gmra.mrb[0].mxu0 %v2007
        %v2043 = vpop.f32.mrb[0].mxu0
        %v2044 = vadd.f32 %v1979, %v2043
        %v2045 = vpop.f32.mrb[0].mxu0
        %v2046 = vpop.f32.mrb[0].mxu0
        %v2047 = vadd.f32 %v1979, %v2046
        %v2048 = vpop.f32.mrb[0].mxu0
        %2049 = vdwg.mxu0
        %v2050 = vadd.f32 %v1833, %v2044
        %v2051 = vadd.f32 %v1834, %v2047
        %2052 = vst.msk [vmem:[#allocation2] sm:$0xff] %vm742, %v2050
        %2053 = vst.msk [vmem:[#allocation2 + $0x8] sm:$0xff] %vm742, %v2051
        %p2054 = scmp.eq.s32.totalorder %s38, 1
        // Predicated region
        $region101: #{tpu_custom_call.1} parent=75 // pred_check
          %p2055 = pneg %p2054
        $region102: #{tpu_custom_call.1} parent=75 // pred_check_branch
          %2057 = sbr.rel (%p2055) target = $region104
        $region103: #{tpu_custom_call.1} parent=75 // pred_region
          %v2058 = vld [vmem:[%s12] sm:$0x1]
          %v2059 = vld [vmem:[%s13] sm:$0x1]
          %v2060 = vsel %vm742, %v2050, 0.0
          %2061 = vadd.xlane.f32.xlu0 %v2060
          %v2062 = vpop.xlane.xlu0 %2061
          %v2063 = vsel %vm742, %v2051, 0.0
          %2064 = vadd.xlane.f32.xlu0 %v2063
          %v2065 = vpop.xlane.xlu0 %2064
          %v2066 = vmul.f32 %v2062, %v749
          %v2067 = vmul.f32 %v2065, %v749
          %v2068 = vsub.f32 %v2050, %v2066
          %v2069 = vsub.f32 %v2051, %v2067
          %v2070 = vmul.f32 %v2068, %v2068
          %v2071 = vmul.f32 %v2069, %v2069
          %v2072 = vsel %vm742, %v2070, 0.0
          %2073 = vadd.xlane.f32.xlu0 %v2072
          %v2074 = vpop.xlane.xlu0 %2073
          %v2075 = vsel %vm742, %v2071, 0.0
          %2076 = vadd.xlane.f32.xlu0 %v2075
          %v2077 = vpop.xlane.xlu0 %2076
          %v2078 = vmul.f32 %v2074, %v749
          %v2079 = vmul.f32 %v2077, %v749
          %v2080 = vadd.f32 %v2078, 1e-05
          %v2081 = vadd.f32 %v2079, 1e-05
          %v2082 = vrsqrt.pop %v2080
          %v2083 = vrsqrt.pop %v2081
          %v2084 = vmul.f32 %v2068, %v2082
          %v2085 = vmul.f32 %v2069, %v2083
          %v2087 = vlaneseq
          %v2088 = vshrl.u32 %v2087, 7
          %v2089 = vsub.s32 0, %v2088
          %v2090 = vrot.slane %v2058, %v2089
          %v2092 = vmul.f32 %v2084, %v2090
          %v2093 = vmul.f32 %v2085, %v2090
          %v2095 = vlaneseq
          %v2096 = vshrl.u32 %v2095, 7
          %v2097 = vsub.s32 0, %v2096
          %v2098 = vrot.slane %v2059, %v2097
          %v2100 = vadd.f32 %v2092, %v2098
          %v2101 = vadd.f32 %v2093, %v2098
          %2102 = vst.msk [vmem:[#allocation13] sm:$0xff] %vm742, %v2100
          %2103 = vst.msk [vmem:[#allocation13 + $0x8] sm:$0xff] %vm742, %v2101
        $region104: #{tpu_custom_call.1} parent=75 // pred_fallthru
          _
        // Predicated region
        $region105: #{tpu_custom_call.1} parent=75 // pred_check
          %p2104 = pneg %p417
        $region106: #{tpu_custom_call.1} parent=75 // pred_check_branch
          %2106 = sbr.rel (%p2104) target = $region108
        $region107: #{tpu_custom_call.1} parent=75 // pred_region
          %s2107 = smul.u32 2, %s37
          %s2109 = ssub.s32 256, 256
          %2110 = vsyncadd [#allocation6], %s2109
          %s2111 = smul.addr %s2107, 128
          %s2112 = scalar_lea.hbm %s14, %s2111
          %s2113 = sshll.u32 [#allocation13], 4
          %s2114 = int_to_ptr.vmem [resolvable:$true] %s2113
          %2119 = dma.vmem_to_hbm [thread:$0]  %s2114, 256, %s2112, [#allocation6], 128, 128, 8
        $region108: #{tpu_custom_call.1} parent=75 // pred_fallthru
          _
        // Predicated region
        $region109: #{tpu_custom_call.1} parent=75 // pred_check
          %p2120 = pneg %p417
        $region110: #{tpu_custom_call.1} parent=75 // pred_check_branch
          %2122 = sbr.rel (%p2120) target = $region112
        $region111: #{tpu_custom_call.1} parent=75 // pred_region
          %2123 = dma.done [#allocation6], 256
        $region112: #{tpu_custom_call.1} parent=75 // pred_fallthru
          _
      $region76: #{tpu_custom_call.1} parent=5 // pred_fallthru
        _
      %p2124 = scmp.le.s32.totalorder 2, %s28
      // Predicated region
      $region113: #{tpu_custom_call.1} parent=5 // pred_check
        %p2125 = pneg %p2124
      $region114: #{tpu_custom_call.1} parent=5 // pred_check_branch
        %2127 = sbr.rel (%p2125) target = $region116
      $region115: #{tpu_custom_call.1} parent=5 // pred_region
        %s2128 = ssub.s32 %s28, 2
      $region116: #{tpu_custom_call.1} parent=5 // pred_fallthru
        _
    $region6: #{tpu_custom_call.1} parent=1 // loop_footer
      %s32 = sadd.s32 1, %s28
    $region7: #{tpu_custom_call.1} parent=1 // loop_footer_branch
      %27 = sbr.rel target = $region3
    $region8: #{tpu_custom_call.1} parent=1 // loop_exit
      _
    %2129 = vsyncpa [#allocation5], 1
    %s2130 = scalar_lea.sflag [#allocation5], 1
    %2131 = vsyncpa %s2130, 1
    %2132 = vsyncpa [#allocation8], 1
    %s2133 = scalar_lea.sflag [#allocation8], 1
    %2134 = vsyncpa %s2133, 1
    %2135 = vsyncpa [#allocation11], 1
    %s2136 = scalar_lea.sflag [#allocation11], 1
    %2137 = vsyncpa %s2136, 1
    %2138 = vsyncpa [#allocation6], 1
    %s2139 = scalar_lea.sflag [#allocation6], 1
    %2140 = vsyncpa %s2139, 1

</llo_original>
